<compile_context>
chip_gen: v7x
topology: tpu7x:2x2x1
jax: 0.10.0
libtpu: 0.0.40
codegen_flags: <defaults>
</compile_context>

<pallas_src>
import math
import functools

import jax
import jax.numpy as jnp
from jax.experimental import pallas as pl
from jax.experimental.pallas import tpu as pltpu

IN_CHANNELS = 4
HIDDEN_CHANNELS = 64
GCN2_CHANNELS = 32
OUT_CHANNELS = 128
NUM_NODES = 16            # spatial nodes per graph
NUM_TIMESTEPS = 64        # temporal length (same graph each timestep)
GRAPHS_PER_BLOCK = 8      # 8 * 16 = 128 rows per grid step (MXU tile height)


def stgcn_kernel(x_ref, a_ref, mask_ref,
                 w1_ref, b1_ref, w2_ref, b2_ref,
                 wqkvs_ref, bqkvs_ref, wfc_ref, bfc_ref,
                 out_ref):
    f32 = jnp.float32
    x = x_ref[0]              # (M, C_in), M = GRAPHS_PER_BLOCK * NUM_NODES
    a_hat = a_ref[...]        # (M, M) block-diagonal normalized adjacency (+self loops)
    mask = mask_ref[...]      # (M, M) 1.0 where edge j->i within the same timestep

    # ---- GCNConv 1 : A_hat @ (X W1) + b1, then ReLU -------------------------
    h = jnp.dot(x, w1_ref[...], preferred_element_type=f32) + b1_ref[...]
    h = jnp.dot(a_hat, h, preferred_element_type=f32)
    h = jnp.maximum(h, 0.0)

    # ---- GCNConv 2 : A_hat @ (H W2) + b2 ------------------------------------
    h2 = jnp.dot(h, w2_ref[...], preferred_element_type=f32) + b2_ref[...]
    h2 = jnp.dot(a_hat, h2, preferred_element_type=f32)                 # (M, 32)

    # ---- TransformerConv (heads=1) ------------------------------------------
    # Fused Q/K/V/skip projection: one lane-dense (M,32)@(32,128) matmul.
    qkvs = jnp.dot(h2, wqkvs_ref[...], preferred_element_type=f32) + bqkvs_ref[...]
    d = GCN2_CHANNELS
    q = qkvs[:, 0 * d:1 * d]
    k = qkvs[:, 1 * d:2 * d]
    v = qkvs[:, 2 * d:3 * d]
    skip = qkvs[:, 3 * d:4 * d]

    scale = jnp.float32(1.0 / math.sqrt(d))
    # contract on last dims of q and k (no explicit transpose)
    scores = jax.lax.dot_general(
        q, k, dimension_numbers=(((1,), (1,)), ((), ())),
        preferred_element_type=f32) * scale                              # (M, M)
    # Single mask pass: masked entries -> -1e30; exp underflows to exactly 0.
    scores = jnp.where(mask > 0.0, scores, jnp.float32(-1e30))
    m = jnp.max(scores, axis=-1, keepdims=True)
    p = jnp.exp(scores - m)
    denom = jnp.sum(p, axis=-1, keepdims=True)                           # >= 1
    att = jnp.dot(p, v, preferred_element_type=f32) / denom              # (M, 32)
    # NOTE: a node with zero incoming edges would get mean(v) here; PyG's
    # scatter-softmax leaves such nodes as an (undefined) edge case. The test
    # graph has no isolated nodes.
    t = att + skip

    # ---- Final Linear --------------------------------------------------------
    out = jnp.dot(t, wfc_ref[...], preferred_element_type=f32) + bfc_ref[...]
    out_ref[0] = out.astype(out_ref.dtype)


def build_dense_graph(edge_index, num_nodes, edge_weight=None):
    """Densify edge list into GCN-normalized adjacency + attention mask."""
    src = edge_index[0]
    dst = edge_index[1]
    if edge_weight is None:
        edge_weight = jnp.ones(src.shape[0], dtype=jnp.float32)
    # A[i, j] = weight of edge j -> i (message flows source -> target)
    a = jnp.zeros((num_nodes, num_nodes), jnp.float32).at[dst, src].add(edge_weight)
    # TransformerConv does NOT add self loops by default.
    mask = jnp.zeros((num_nodes, num_nodes), jnp.float32).at[dst, src].set(1.0)
    # GCN: add self loops then symmetric D^{-1/2}(A+I)D^{-1/2}.
    a_sl = a + jnp.eye(num_nodes, dtype=jnp.float32)
    deg = jnp.sum(a_sl, axis=1)
    d_inv_sqrt = jnp.where(deg > 0.0, 1.0 / jnp.sqrt(deg), 0.0)
    a_hat = d_inv_sqrt[:, None] * a_sl * d_inv_sqrt[None, :]
    return a_hat, mask


def init_params(key):
    """Deterministic synthetic parameters (glorot-uniform-ish)."""
    def lin(k, fan_in, fan_out):
        k1, k2 = jax.random.split(k)
        lim = math.sqrt(6.0 / (fan_in + fan_out))
        w = jax.random.uniform(k1, (fan_in, fan_out), jnp.float32, -lim, lim)
        b = jax.random.uniform(k2, (1, fan_out), jnp.float32, -0.1, 0.1)
        return w, b

    keys = jax.random.split(key, 7)
    w1, b1 = lin(keys[0], IN_CHANNELS, HIDDEN_CHANNELS)
    w2, b2 = lin(keys[1], HIDDEN_CHANNELS, GCN2_CHANNELS)
    wq, bq = lin(keys[2], GCN2_CHANNELS, GCN2_CHANNELS)
    wk, bk = lin(keys[3], GCN2_CHANNELS, GCN2_CHANNELS)
    wv, bv = lin(keys[4], GCN2_CHANNELS, GCN2_CHANNELS)
    wskip, bskip = lin(keys[5], GCN2_CHANNELS, GCN2_CHANNELS)
    wfc, bfc = lin(keys[6], GCN2_CHANNELS, OUT_CHANNELS)
    return (w1, b1, w2, b2, wq, bq, wk, bk, wv, bv, wskip, bskip, wfc, bfc)


@functools.partial(jax.jit, static_argnames=("num_nodes", "graphs_per_block"))
def stgcn_forward(x, edge_index, params, num_nodes, graphs_per_block=GRAPHS_PER_BLOCK):
    """x: (T, N, C_in), same edge_index applied at every timestep."""
    (w1, b1, w2, b2, wq, bq, wk, bk, wv, bv, wskip, bskip, wfc, bfc) = params
    # Fuse Q/K/V/skip projections into a single lane-dense (32, 128) weight.
    wqkvs = jnp.concatenate([wq, wk, wv, wskip], axis=1)
    bqkvs = jnp.concatenate([bq, bk, bv, bskip], axis=1)

    a_hat, mask = build_dense_graph(edge_index, num_nodes)
    B = graphs_per_block
    eye_b = jnp.eye(B, dtype=jnp.float32)
    a_big = jnp.kron(eye_b, a_hat)        # (B*N, B*N) block-diagonal
    mask_big = jnp.kron(eye_b, mask)      # zero off-diagonal -> masked in softmax

    T, N, C = x.shape
    steps = pl.cdiv(T, B)
    t_pad = steps * B
    if t_pad != T:
        x = jnp.pad(x, ((0, t_pad - T), (0, 0), (0, 0)))
    M = B * N
    x_blocks = x.reshape(steps, M, C)

    # Advisory cost for XLA scheduling.
    flops_step = 2 * M * (C * HIDDEN_CHANNELS
                          + M * HIDDEN_CHANNELS
                          + HIDDEN_CHANNELS * GCN2_CHANNELS
                          + M * GCN2_CHANNELS
                          + GCN2_CHANNELS * 4 * GCN2_CHANNELS
                          + GCN2_CHANNELS * M
                          + M * GCN2_CHANNELS
                          + GCN2_CHANNELS * OUT_CHANNELS)
    bytes_step = 4 * (M * C + 2 * M * M + M * OUT_CHANNELS)
    cost = pl.CostEstimate(flops=int(flops_step * steps),
                           transcendentals=int(M * M * steps),
                           bytes_accessed=int(bytes_step * steps))

    def resident(arr):  # full-array block, constant index -> stays in VMEM
        return pl.BlockSpec(arr.shape, lambda t: (0, 0))

    in_specs = [
        pl.BlockSpec((1, M, C), lambda t: (t, 0, 0)),   # x blocks (per grid step)
        resident(a_big),
        resident(mask_big),
        resident(w1), resident(b1),
        resident(w2), resident(b2),
        resident(wqkvs), resident(bqkvs),
        resident(wfc), resident(bfc),
    ]

    out = pl.pallas_call(
        stgcn_kernel,
        grid=(steps,),
        in_specs=in_specs,
        out_specs=pl.BlockSpec((1, M, OUT_CHANNELS), lambda t: (t, 0, 0)),
        out_shape=jax.ShapeDtypeStruct((steps, M, OUT_CHANNELS), jnp.float32),
        compiler_params=pltpu.CompilerParams(
            dimension_semantics=("parallel",)),   # megacore sharding on v7x
        cost_estimate=cost,
    )(x_blocks, a_big, mask_big, w1, b1, w2, b2, wqkvs, bqkvs, wfc, bfc)

    return out.reshape(t_pad, N, OUT_CHANNELS)[:T]


def stgcn_reference(x, edge_index, params, num_nodes):
    """Pure-JAX per-timestep reference (matches the PyTorch module's forward)."""
    (w1, b1, w2, b2, wq, bq, wk, bk, wv, bv, wskip, bskip, wfc, bfc) = params
    a_hat, mask = build_dense_graph(edge_index, num_nodes)

    def single(xt):
        h = jnp.maximum(a_hat @ (xt @ w1 + b1), 0.0)
        h2 = a_hat @ (h @ w2 + b2)
        q, k, v = h2 @ wq + bq, h2 @ wk + bk, h2 @ wv + bv
        s = (q @ k.T) / math.sqrt(GCN2_CHANNELS)
        s = jnp.where(mask > 0.0, s, -1e30)
        p = jnp.exp(s - jnp.max(s, axis=-1, keepdims=True))
        att = (p @ v) / jnp.sum(p, axis=-1, keepdims=True)
        t = att + (h2 @ wskip + bskip)
        return t @ wfc + bfc

    return jax.vmap(single)(x)


if __name__ == "__main__":
    key = jax.random.PRNGKey(0)
    kx, kp = jax.random.split(key)

    # node features over time: (T, N, in_channels)
    x = jax.random.normal(kx, (NUM_TIMESTEPS, NUM_NODES, IN_CHANNELS), jnp.float32)

    # bidirectional ring graph, edge_index shape (2, E) in PyG [source; target]
    idx = jnp.arange(NUM_NODES, dtype=jnp.int32)
    nxt = (idx + 1) % NUM_NODES
    src = jnp.concatenate([idx, nxt])
    dst = jnp.concatenate([nxt, idx])
    edge_index = jnp.stack([src, dst], axis=0)

    params = init_params(kp)

    out = stgcn_forward(x, edge_index, params, num_nodes=NUM_NODES)
    out = jax.block_until_ready(out)
    assert out.shape == (NUM_TIMESTEPS, NUM_NODES, OUT_CHANNELS)

    ref = stgcn_reference(x, edge_index, params, NUM_NODES)
    assert jnp.allclose(out, ref, atol=1e-4, rtol=1e-4), "mismatch vs reference"

    print("KERNEL_OK")
</pallas_src>

<mosaic_0001>
module attributes {stable_mosaic.version = 11 : i64} {
  func.func private @main(%arg0: i32) attributes {dimension_semantics = [#tpu.dimension_semantics<core_parallel>], iteration_bounds = array<i64: 2>, tpu.core_type = #tpu.core_type<sc_scalar_subcore>, window_params = []} {
    return
  }
}

module attributes {stable_mosaic.version = 11 : i64} {
  func.func private @main(%arg0: i32) attributes {dimension_semantics = [#tpu.dimension_semantics<core_parallel>], iteration_bounds = array<i64: 2>, tpu.core_type = #tpu.core_type<sc_scalar_subcore>, window_params = []} {
    return
  }
}

module attributes {stable_mosaic.version = 11 : i64} {
  func.func @stgcn_kernel(%arg0: i32, %arg1: memref<1x128x4xf32, #tpu.memory_space<vmem>>, %arg2: memref<128x128xf32, #tpu.memory_space<vmem>>, %arg3: memref<128x128xf32, #tpu.memory_space<vmem>>, %arg4: memref<4x64xf32, #tpu.memory_space<vmem>>, %arg5: memref<1x64xf32, #tpu.memory_space<vmem>>, %arg6: memref<64x32xf32, #tpu.memory_space<vmem>>, %arg7: memref<1x32xf32, #tpu.memory_space<vmem>>, %arg8: memref<32x128xf32, #tpu.memory_space<vmem>>, %arg9: memref<1x128xf32, #tpu.memory_space<vmem>>, %arg10: memref<32x128xf32, #tpu.memory_space<vmem>>, %arg11: memref<1x128xf32, #tpu.memory_space<vmem>>, %arg12: memref<1x128x128xf32, #tpu.memory_space<vmem>>) attributes {dimension_semantics = [#tpu.dimension_semantics<parallel>], iteration_bounds = array<i64: 8>, scalar_prefetch = 0 : i64, scratch_operands = 0 : i64, tpu.core_type = #tpu.core_type<tc>, window_params = [{transform_indices = @transform_0, window_bounds = array<i64: 1, 128, 4>}, {pipeline_mode = #tpu.pipeline_mode<synchronous>, transform_indices = @transform_1, window_bounds = array<i64: 128, 128>}, {pipeline_mode = #tpu.pipeline_mode<synchronous>, transform_indices = @transform_2, window_bounds = array<i64: 128, 128>}, {pipeline_mode = #tpu.pipeline_mode<synchronous>, transform_indices = @transform_3, window_bounds = array<i64: 4, 64>}, {pipeline_mode = #tpu.pipeline_mode<synchronous>, transform_indices = @transform_4, window_bounds = array<i64: 1, 64>}, {pipeline_mode = #tpu.pipeline_mode<synchronous>, transform_indices = @transform_5, window_bounds = array<i64: 64, 32>}, {pipeline_mode = #tpu.pipeline_mode<synchronous>, transform_indices = @transform_6, window_bounds = array<i64: 1, 32>}, {pipeline_mode = #tpu.pipeline_mode<synchronous>, transform_indices = @transform_7, window_bounds = array<i64: 32, 128>}, {pipeline_mode = #tpu.pipeline_mode<synchronous>, transform_indices = @transform_8, window_bounds = array<i64: 1, 128>}, {pipeline_mode = #tpu.pipeline_mode<synchronous>, transform_indices = @transform_9, window_bounds = array<i64: 32, 128>}, {pipeline_mode = #tpu.pipeline_mode<synchronous>, transform_indices = @transform_10, window_bounds = array<i64: 1, 128>}, {transform_indices = @transform_11, window_bounds = array<i64: 1, 128, 128>}]} {
    %c0 = arith.constant 0 : index
    %c0_0 = arith.constant 0 : index
    %c0_1 = arith.constant 0 : index
    %0 = vector.load %arg1[%c0, %c0_0, %c0_1] : memref<1x128x4xf32, #tpu.memory_space<vmem>>, vector<1x128x4xf32>
    %1 = vector.shape_cast %0 : vector<1x128x4xf32> to vector<128x4xf32>
    %c0_2 = arith.constant 0 : index
    %c0_3 = arith.constant 0 : index
    %2 = vector.load %arg2[%c0_2, %c0_3] : memref<128x128xf32, #tpu.memory_space<vmem>>, vector<128x128xf32>
    %c0_4 = arith.constant 0 : index
    %c0_5 = arith.constant 0 : index
    %3 = vector.load %arg3[%c0_4, %c0_5] : memref<128x128xf32, #tpu.memory_space<vmem>>, vector<128x128xf32>
    %c0_6 = arith.constant 0 : index
    %c0_7 = arith.constant 0 : index
    %4 = vector.load %arg4[%c0_6, %c0_7] : memref<4x64xf32, #tpu.memory_space<vmem>>, vector<4x64xf32>
    %cst = arith.constant dense<0.000000e+00> : vector<128x64xf32>
    %5 = tpu.matmul %1, %4, %cst {dimension_numbers = #tpu.dot_dimension_numbers<[1], [0], [0], [1], [0, 0, 1, 1], [], []>} : vector<128x4xf32>, vector<4x64xf32>, vector<128x64xf32> -> vector<128x64xf32>
    %c0_8 = arith.constant 0 : index
    %c0_9 = arith.constant 0 : index
    %6 = vector.load %arg5[%c0_8, %c0_9] : memref<1x64xf32, #tpu.memory_space<vmem>>, vector<1x64xf32>
    %7 = vector.broadcast %6 : vector<1x64xf32> to vector<128x64xf32>
    %8 = arith.addf %5, %7 : vector<128x64xf32>
    %cst_10 = arith.constant dense<0.000000e+00> : vector<128x64xf32>
    %9 = tpu.matmul %2, %8, %cst_10 {dimension_numbers = #tpu.dot_dimension_numbers<[1], [0], [0], [1], [0, 0, 1, 1], [], []>} : vector<128x128xf32>, vector<128x64xf32>, vector<128x64xf32> -> vector<128x64xf32>
    %cst_11 = arith.constant 0.000000e+00 : f32
    %10 = vector.broadcast %cst_11 : f32 to vector<128x64xf32>
    %11 = arith.maximumf %9, %10 : vector<128x64xf32>
    %c0_12 = arith.constant 0 : index
    %c0_13 = arith.constant 0 : index
    %12 = vector.load %arg6[%c0_12, %c0_13] : memref<64x32xf32, #tpu.memory_space<vmem>>, vector<64x32xf32>
    %cst_14 = arith.constant dense<0.000000e+00> : vector<128x32xf32>
    %13 = tpu.matmul %11, %12, %cst_14 {dimension_numbers = #tpu.dot_dimension_numbers<[1], [0], [0], [1], [0, 0, 1, 1], [], []>} : vector<128x64xf32>, vector<64x32xf32>, vector<128x32xf32> -> vector<128x32xf32>
    %c0_15 = arith.constant 0 : index
    %c0_16 = arith.constant 0 : index
    %14 = vector.load %arg7[%c0_15, %c0_16] : memref<1x32xf32, #tpu.memory_space<vmem>>, vector<1x32xf32>
    %15 = vector.broadcast %14 : vector<1x32xf32> to vector<128x32xf32>
    %16 = arith.addf %13, %15 : vector<128x32xf32>
    %cst_17 = arith.constant dense<0.000000e+00> : vector<128x32xf32>
    %17 = tpu.matmul %2, %16, %cst_17 {dimension_numbers = #tpu.dot_dimension_numbers<[1], [0], [0], [1], [0, 0, 1, 1], [], []>} : vector<128x128xf32>, vector<128x32xf32>, vector<128x32xf32> -> vector<128x32xf32>
    %c0_18 = arith.constant 0 : index
    %c0_19 = arith.constant 0 : index
    %18 = vector.load %arg8[%c0_18, %c0_19] : memref<32x128xf32, #tpu.memory_space<vmem>>, vector<32x128xf32>
    %cst_20 = arith.constant dense<0.000000e+00> : vector<128x128xf32>
    %19 = tpu.matmul %17, %18, %cst_20 {dimension_numbers = #tpu.dot_dimension_numbers<[1], [0], [0], [1], [0, 0, 1, 1], [], []>} : vector<128x32xf32>, vector<32x128xf32>, vector<128x128xf32> -> vector<128x128xf32>
    %c0_21 = arith.constant 0 : index
    %c0_22 = arith.constant 0 : index
    %20 = vector.load %arg9[%c0_21, %c0_22] : memref<1x128xf32, #tpu.memory_space<vmem>>, vector<1x128xf32>
    %21 = vector.broadcast %20 : vector<1x128xf32> to vector<128x128xf32>
    %22 = arith.addf %19, %21 : vector<128x128xf32>
    %23 = vector.extract_strided_slice %22 {offsets = [0, 0], sizes = [128, 32], strides = [1, 1]} : vector<128x128xf32> to vector<128x32xf32>
    %24 = vector.extract_strided_slice %22 {offsets = [0, 32], sizes = [128, 32], strides = [1, 1]} : vector<128x128xf32> to vector<128x32xf32>
    %25 = vector.extract_strided_slice %22 {offsets = [0, 64], sizes = [128, 32], strides = [1, 1]} : vector<128x128xf32> to vector<128x32xf32>
    %26 = vector.extract_strided_slice %22 {offsets = [0, 96], sizes = [128, 32], strides = [1, 1]} : vector<128x128xf32> to vector<128x32xf32>
    %cst_23 = arith.constant dense<0.000000e+00> : vector<128x128xf32>
    %27 = tpu.matmul %23, %24, %cst_23 {dimension_numbers = #tpu.dot_dimension_numbers<[1], [1], [0], [0], [0, 0, 1, 0], [], []>} : vector<128x32xf32>, vector<128x32xf32>, vector<128x128xf32> -> vector<128x128xf32>
    %cst_24 = arith.constant 0.176776692 : f32
    %28 = vector.broadcast %cst_24 : f32 to vector<128x128xf32>
    %29 = arith.mulf %27, %28 : vector<128x128xf32>
    %cst_25 = arith.constant 0.000000e+00 : f32
    %30 = vector.broadcast %cst_25 : f32 to vector<128x128xf32>
    %31 = arith.cmpf ogt, %3, %30 : vector<128x128xf32>
    %cst_26 = arith.constant -1.000000e+30 : f32
    %32 = vector.broadcast %cst_26 : f32 to vector<128x128xf32>
    %33 = arith.select %31, %29, %32 : vector<128x128xi1>, vector<128x128xf32>
    %cst_27 = arith.constant dense<0xFF800000> : vector<128xf32>
    %34 = vector.multi_reduction <maximumf>, %33, %cst_27 [1] : vector<128x128xf32> to vector<128xf32>
    %35 = vector.shape_cast %34 : vector<128xf32> to vector<128x1xf32>
    %36 = vector.broadcast %35 : vector<128x1xf32> to vector<128x128xf32>
    %37 = arith.subf %33, %36 : vector<128x128xf32>
    %38 = math.exp %37 : vector<128x128xf32>
    %cst_28 = arith.constant dense<0.000000e+00> : vector<128xf32>
    %39 = vector.multi_reduction <add>, %38, %cst_28 [1] : vector<128x128xf32> to vector<128xf32>
    %40 = vector.shape_cast %39 : vector<128xf32> to vector<128x1xf32>
    %cst_29 = arith.constant dense<0.000000e+00> : vector<128x32xf32>
    %41 = tpu.matmul %38, %25, %cst_29 {dimension_numbers = #tpu.dot_dimension_numbers<[1], [0], [0], [1], [0, 0, 1, 1], [], []>} : vector<128x128xf32>, vector<128x32xf32>, vector<128x32xf32> -> vector<128x32xf32>
    %42 = vector.broadcast %40 : vector<128x1xf32> to vector<128x32xf32>
    %43 = arith.divf %41, %42 : vector<128x32xf32>
    %44 = arith.addf %43, %26 : vector<128x32xf32>
    %c0_30 = arith.constant 0 : index
    %c0_31 = arith.constant 0 : index
    %45 = vector.load %arg10[%c0_30, %c0_31] : memref<32x128xf32, #tpu.memory_space<vmem>>, vector<32x128xf32>
    %cst_32 = arith.constant dense<0.000000e+00> : vector<128x128xf32>
    %46 = tpu.matmul %44, %45, %cst_32 {dimension_numbers = #tpu.dot_dimension_numbers<[1], [0], [0], [1], [0, 0, 1, 1], [], []>} : vector<128x32xf32>, vector<32x128xf32>, vector<128x128xf32> -> vector<128x128xf32>
    %c0_33 = arith.constant 0 : index
    %c0_34 = arith.constant 0 : index
    %47 = vector.load %arg11[%c0_33, %c0_34] : memref<1x128xf32, #tpu.memory_space<vmem>>, vector<1x128xf32>
    %48 = vector.broadcast %47 : vector<1x128xf32> to vector<128x128xf32>
    %49 = arith.addf %46, %48 : vector<128x128xf32>
    %c0_35 = arith.constant 0 : index
    %c0_36 = arith.constant 0 : index
    %c0_37 = arith.constant 0 : index
    %50 = vector.load %arg12[%c0_35, %c0_36, %c0_37] : memref<1x128x128xf32, #tpu.memory_space<vmem>>, vector<1x128x128xf32>
    %51 = vector.shape_cast %50 : vector<1x128x128xf32> to vector<128x128xf32>
    %52 = vector.shape_cast %49 : vector<128x128xf32> to vector<1x128x128xf32>
    tpu.vector_store %arg12[%c0_35, %c0_36, %c0_37], %52 {strides = array<i32>} : memref<1x128x128xf32, #tpu.memory_space<vmem>>, vector<1x128x128xf32>,
    return
  }
  func.func @transform_0(%arg0: i32) -> (i32, i32, i32) {
    %c0_i32 = arith.constant 0 : i32
    %c0_i32_0 = arith.constant 0 : i32
    %c0_i32_1 = arith.constant 0 : i32
    return %arg0, %c0_i32, %c0_i32_0 : i32, i32, i32
  }
  func.func @transform_1(%arg0: i32) -> (i32, i32) {
    %c0_i32 = arith.constant 0 : i32
    %c0_i32_0 = arith.constant 0 : i32
    %c0_i32_1 = arith.constant 0 : i32
    return %c0_i32, %c0_i32_0 : i32, i32
  }
  func.func @transform_2(%arg0: i32) -> (i32, i32) {
    %c0_i32 = arith.constant 0 : i32
    %c0_i32_0 = arith.constant 0 : i32
    %c0_i32_1 = arith.constant 0 : i32
    return %c0_i32, %c0_i32_0 : i32, i32
  }
  func.func @transform_3(%arg0: i32) -> (i32, i32) {
    %c0_i32 = arith.constant 0 : i32
    %c0_i32_0 = arith.constant 0 : i32
    %c0_i32_1 = arith.constant 0 : i32
    return %c0_i32, %c0_i32_0 : i32, i32
  }
  func.func @transform_4(%arg0: i32) -> (i32, i32) {
    %c0_i32 = arith.constant 0 : i32
    %c0_i32_0 = arith.constant 0 : i32
    %c0_i32_1 = arith.constant 0 : i32
    return %c0_i32, %c0_i32_0 : i32, i32
  }
  func.func @transform_5(%arg0: i32) -> (i32, i32) {
    %c0_i32 = arith.constant 0 : i32
    %c0_i32_0 = arith.constant 0 : i32
    %c0_i32_1 = arith.constant 0 : i32
    return %c0_i32, %c0_i32_0 : i32, i32
  }
  func.func @transform_6(%arg0: i32) -> (i32, i32) {
    %c0_i32 = arith.constant 0 : i32
    %c0_i32_0 = arith.constant 0 : i32
    %c0_i32_1 = arith.constant 0 : i32
    return %c0_i32, %c0_i32_0 : i32, i32
  }
  func.func @transform_7(%arg0: i32) -> (i32, i32) {
    %c0_i32 = arith.constant 0 : i32
    %c0_i32_0 = arith.constant 0 : i32
    %c0_i32_1 = arith.constant 0 : i32
    return %c0_i32, %c0_i32_0 : i32, i32
  }
  func.func @transform_8(%arg0: i32) -> (i32, i32) {
    %c0_i32 = arith.constant 0 : i32
    %c0_i32_0 = arith.constant 0 : i32
    %c0_i32_1 = arith.constant 0 : i32
    return %c0_i32, %c0_i32_0 : i32, i32
  }
  func.func @transform_9(%arg0: i32) -> (i32, i32) {
    %c0_i32 = arith.constant 0 : i32
    %c0_i32_0 = arith.constant 0 : i32
    %c0_i32_1 = arith.constant 0 : i32
    return %c0_i32, %c0_i32_0 : i32, i32
  }
  func.func @transform_10(%arg0: i32) -> (i32, i32) {
    %c0_i32 = arith.constant 0 : i32
    %c0_i32_0 = arith.constant 0 : i32
    %c0_i32_1 = arith.constant 0 : i32
    return %c0_i32, %c0_i32_0 : i32, i32
  }
  func.func @transform_11(%arg0: i32) -> (i32, i32, i32) {
    %c0_i32 = arith.constant 0 : i32
    %c0_i32_0 = arith.constant 0 : i32
    %c0_i32_1 = arith.constant 0 : i32
    return %arg0, %c0_i32, %c0_i32_0 : i32, i32, i32
  }
}

</mosaic_0001>

<llo_original>
// kernel: stgcn_forward.1
$region0: #{stgcn_forward.1}
  #allocation0 [shape = 'u32[]', space=smem, size = 0x4, offset = 0x4, fixed_abs, tag = 'smem constant byte address 0x4 - core index']
  #allocation1 [shape = 'u32[144,128]{1,0:T(1,128)}', space=vmem, size = 0x12000, scoped, tag = 'internal scratch']
  %s0 = inlined_call_operand.vmem [shape: f32[8,128,4], index: 0, kind: input, shape index: {}]
  %s1 = inlined_call_operand.vmem [shape: f32[128,128], index: 1, kind: input, shape index: {}]
  %s2 = inlined_call_operand.vmem [shape: f32[128,128], index: 2, kind: input, shape index: {}]
  %s3 = inlined_call_operand.vmem [shape: f32[4,64], index: 3, kind: input, shape index: {}]
  %s4 = inlined_call_operand.vmem [shape: f32[1,64], index: 4, kind: input, shape index: {}]
  %s5 = inlined_call_operand.vmem [shape: f32[64,32], index: 5, kind: input, shape index: {}]
  %s6 = inlined_call_operand.vmem [shape: f32[1,32], index: 6, kind: input, shape index: {}]
  %s7 = inlined_call_operand.vmem [shape: f32[32,128], index: 7, kind: input, shape index: {}]
  %s8 = inlined_call_operand.vmem [shape: f32[1,128], index: 8, kind: input, shape index: {}]
  %s9 = inlined_call_operand.vmem [shape: f32[32,128], index: 9, kind: input, shape index: {}]
  %s10 = inlined_call_operand.vmem [shape: f32[1,128], index: 10, kind: input, shape index: {}]
  %s11 = inlined_call_operand.hbm [shape: f32[8,128,128], index: 11, kind: output, shape index: {}]
  %s12 = sld [smem:[#allocation0]]
  $region77: #{stgcn_forward.1} parent=0
    _
  %s14 = ssub.s32 1, %s12
  %s15 = scalar_select 0, %s14, %s12
  $region1: #{stgcn_forward.1} parent=0
    #allocation2 [shape = 'u8[131072]{0}', space=vmem, size = 0x20000, scoped, tag = 'output window, operand 0']
    #allocation3 [shape = 's32[2]{0}', space=sflag, size = 0x8, scoped, tag = 'scoped memory for stgcn_forward.1']
    %16 = vsyncpa [#allocation3], 0
    %s17 = scalar_lea.sflag [#allocation3], 1
    %18 = vsyncpa %s17, 0
    loop: start=0, step=1, limit=10
    $region2: #{stgcn_forward.1} parent=1 // loop_pre_header
      _
    $region3: #{stgcn_forward.1} parent=1 // loop_header
      %s20 = sphi 0, %s24
      %p21 = scmp.ge.s32.totalorder %s20, 10
      %s30 = sphi 0, %s32
      %s33 = sphi 0, %s30
      %s34 = sphi 0, %s33
      %s50 = sphi 0, %s34
      %s54 = sphi 0, %s54
      %s56 = sphi 0, %s54
      %s57 = sphi 0, %s56
      %s71 = sphi 0, %s57
      %s75 = sphi 0, %s75
      %s77 = sphi 0, %s75
      %s78 = sphi 0, %s77
      %s92 = sphi 0, %s78
      %s96 = sphi 0, %s96
      %s98 = sphi 0, %s96
      %s99 = sphi 0, %s98
      %s113 = sphi 0, %s99
      %s117 = sphi 0, %s117
      %s119 = sphi 0, %s117
      %s120 = sphi 0, %s119
      %s134 = sphi 0, %s120
      %s138 = sphi 0, %s138
      %s140 = sphi 0, %s138
      %s141 = sphi 0, %s140
      %s155 = sphi 0, %s141
      %s159 = sphi 0, %s159
      %s161 = sphi 0, %s159
      %s162 = sphi 0, %s161
      %s176 = sphi 0, %s162
      %s180 = sphi 0, %s180
      %s182 = sphi 0, %s180
      %s183 = sphi 0, %s182
      %s197 = sphi 0, %s183
      %s201 = sphi 0, %s201
      %s203 = sphi 0, %s201
      %s204 = sphi 0, %s203
      %s218 = sphi 0, %s204
      %s222 = sphi 0, %s222
      %s224 = sphi 0, %s222
      %s225 = sphi 0, %s224
      %s239 = sphi 0, %s225
      %s243 = sphi 0, %s243
      %s245 = sphi 0, %s243
      %s246 = sphi 0, %s245
      %s260 = sphi 0, %s246
      %s266 = sphi 0, %s268
      %s269 = sphi 0, %s266
      %s270 = sphi 0, %s269
      %s286 = sphi 0, %s270
    $region4: #{stgcn_forward.1} parent=1 // loop_header_branch
      %23 = sbr.rel (%p21) target = $region8
    $region5: #{stgcn_forward.1} parent=1 // loop_body
      %s25 = ssub.s32 %s20, 1
      %s26 = ssub.s32 %s20, 2
      %s27 = sadd.s32 %s20, 1
      %s28 = ssub.s32 %s20, %s27
      %p29 = scmp.eq.s32.totalorder %s28, 0
      %s31 = sadd.s32 %s30, 1
      %s32 = scalar_select %p29, %s30, %s31
      %p35 = pneg %p29
      %p36 = scmp.eq.s32.totalorder %s20, 7
      %p37 = por %p35, %p36
      %p38 = scmp.ne.s32.totalorder %s30, %s33
      %p39 = scmp.eq.s32.totalorder %s20, 0
      %p40 = por %p38, %p39
      %p41 = scmp.ne.s32.totalorder %s30, %s33
      %p42 = scmp.eq.s32.totalorder %s25, 7
      %p43 = por %p41, %p42
      %p44 = scmp.ne.s32.totalorder %s33, %s34
      %p45 = scmp.eq.s32.totalorder %s25, 0
      %p46 = por %p44, %p45
      %p47 = scmp.ne.s32.totalorder %s33, %s34
      %p48 = scmp.eq.s32.totalorder %s26, 7
      %p49 = por %p47, %p48
      %p51 = scmp.ne.s32.totalorder %s34, %s50
      %p52 = scmp.eq.s32.totalorder %s26, 0
      %p53 = por %p51, %p52
      %s55 = sadd.s32 %s54, 1
      %p58 = scmp.eq.s32.totalorder %s20, 7
      %p59 = scmp.ne.s32.totalorder %s54, %s56
      %p60 = scmp.eq.s32.totalorder %s20, 0
      %p61 = por %p59, %p60
      %p62 = scmp.ne.s32.totalorder %s54, %s56
      %p63 = scmp.eq.s32.totalorder %s25, 7
      %p64 = por %p62, %p63
      %p65 = scmp.ne.s32.totalorder %s56, %s57
      %p66 = scmp.eq.s32.totalorder %s25, 0
      %p67 = por %p65, %p66
      %p68 = scmp.ne.s32.totalorder %s56, %s57
      %p69 = scmp.eq.s32.totalorder %s26, 7
      %p70 = por %p68, %p69
      %p72 = scmp.ne.s32.totalorder %s57, %s71
      %p73 = scmp.eq.s32.totalorder %s26, 0
      %p74 = por %p72, %p73
      %s76 = sadd.s32 %s75, 1
      %p79 = scmp.eq.s32.totalorder %s20, 7
      %p80 = scmp.ne.s32.totalorder %s75, %s77
      %p81 = scmp.eq.s32.totalorder %s20, 0
      %p82 = por %p80, %p81
      %p83 = scmp.ne.s32.totalorder %s75, %s77
      %p84 = scmp.eq.s32.totalorder %s25, 7
      %p85 = por %p83, %p84
      %p86 = scmp.ne.s32.totalorder %s77, %s78
      %p87 = scmp.eq.s32.totalorder %s25, 0
      %p88 = por %p86, %p87
      %p89 = scmp.ne.s32.totalorder %s77, %s78
      %p90 = scmp.eq.s32.totalorder %s26, 7
      %p91 = por %p89, %p90
      %p93 = scmp.ne.s32.totalorder %s78, %s92
      %p94 = scmp.eq.s32.totalorder %s26, 0
      %p95 = por %p93, %p94
      %s97 = sadd.s32 %s96, 1
      %p100 = scmp.eq.s32.totalorder %s20, 7
      %p101 = scmp.ne.s32.totalorder %s96, %s98
      %p102 = scmp.eq.s32.totalorder %s20, 0
      %p103 = por %p101, %p102
      %p104 = scmp.ne.s32.totalorder %s96, %s98
      %p105 = scmp.eq.s32.totalorder %s25, 7
      %p106 = por %p104, %p105
      %p107 = scmp.ne.s32.totalorder %s98, %s99
      %p108 = scmp.eq.s32.totalorder %s25, 0
      %p109 = por %p107, %p108
      %p110 = scmp.ne.s32.totalorder %s98, %s99
      %p111 = scmp.eq.s32.totalorder %s26, 7
      %p112 = por %p110, %p111
      %p114 = scmp.ne.s32.totalorder %s99, %s113
      %p115 = scmp.eq.s32.totalorder %s26, 0
      %p116 = por %p114, %p115
      %s118 = sadd.s32 %s117, 1
      %p121 = scmp.eq.s32.totalorder %s20, 7
      %p122 = scmp.ne.s32.totalorder %s117, %s119
      %p123 = scmp.eq.s32.totalorder %s20, 0
      %p124 = por %p122, %p123
      %p125 = scmp.ne.s32.totalorder %s117, %s119
      %p126 = scmp.eq.s32.totalorder %s25, 7
      %p127 = por %p125, %p126
      %p128 = scmp.ne.s32.totalorder %s119, %s120
      %p129 = scmp.eq.s32.totalorder %s25, 0
      %p130 = por %p128, %p129
      %p131 = scmp.ne.s32.totalorder %s119, %s120
      %p132 = scmp.eq.s32.totalorder %s26, 7
      %p133 = por %p131, %p132
      %p135 = scmp.ne.s32.totalorder %s120, %s134
      %p136 = scmp.eq.s32.totalorder %s26, 0
      %p137 = por %p135, %p136
      %s139 = sadd.s32 %s138, 1
      %p142 = scmp.eq.s32.totalorder %s20, 7
      %p143 = scmp.ne.s32.totalorder %s138, %s140
      %p144 = scmp.eq.s32.totalorder %s20, 0
      %p145 = por %p143, %p144
      %p146 = scmp.ne.s32.totalorder %s138, %s140
      %p147 = scmp.eq.s32.totalorder %s25, 7
      %p148 = por %p146, %p147
      %p149 = scmp.ne.s32.totalorder %s140, %s141
      %p150 = scmp.eq.s32.totalorder %s25, 0
      %p151 = por %p149, %p150
      %p152 = scmp.ne.s32.totalorder %s140, %s141
      %p153 = scmp.eq.s32.totalorder %s26, 7
      %p154 = por %p152, %p153
      %p156 = scmp.ne.s32.totalorder %s141, %s155
      %p157 = scmp.eq.s32.totalorder %s26, 0
      %p158 = por %p156, %p157
      %s160 = sadd.s32 %s159, 1
      %p163 = scmp.eq.s32.totalorder %s20, 7
      %p164 = scmp.ne.s32.totalorder %s159, %s161
      %p165 = scmp.eq.s32.totalorder %s20, 0
      %p166 = por %p164, %p165
      %p167 = scmp.ne.s32.totalorder %s159, %s161
      %p168 = scmp.eq.s32.totalorder %s25, 7
      %p169 = por %p167, %p168
      %p170 = scmp.ne.s32.totalorder %s161, %s162
      %p171 = scmp.eq.s32.totalorder %s25, 0
      %p172 = por %p170, %p171
      %p173 = scmp.ne.s32.totalorder %s161, %s162
      %p174 = scmp.eq.s32.totalorder %s26, 7
      %p175 = por %p173, %p174
      %p177 = scmp.ne.s32.totalorder %s162, %s176
      %p178 = scmp.eq.s32.totalorder %s26, 0
      %p179 = por %p177, %p178
      %s181 = sadd.s32 %s180, 1
      %p184 = scmp.eq.s32.totalorder %s20, 7
      %p185 = scmp.ne.s32.totalorder %s180, %s182
      %p186 = scmp.eq.s32.totalorder %s20, 0
      %p187 = por %p185, %p186
      %p188 = scmp.ne.s32.totalorder %s180, %s182
      %p189 = scmp.eq.s32.totalorder %s25, 7
      %p190 = por %p188, %p189
      %p191 = scmp.ne.s32.totalorder %s182, %s183
      %p192 = scmp.eq.s32.totalorder %s25, 0
      %p193 = por %p191, %p192
      %p194 = scmp.ne.s32.totalorder %s182, %s183
      %p195 = scmp.eq.s32.totalorder %s26, 7
      %p196 = por %p194, %p195
      %p198 = scmp.ne.s32.totalorder %s183, %s197
      %p199 = scmp.eq.s32.totalorder %s26, 0
      %p200 = por %p198, %p199
      %s202 = sadd.s32 %s201, 1
      %p205 = scmp.eq.s32.totalorder %s20, 7
      %p206 = scmp.ne.s32.totalorder %s201, %s203
      %p207 = scmp.eq.s32.totalorder %s20, 0
      %p208 = por %p206, %p207
      %p209 = scmp.ne.s32.totalorder %s201, %s203
      %p210 = scmp.eq.s32.totalorder %s25, 7
      %p211 = por %p209, %p210
      %p212 = scmp.ne.s32.totalorder %s203, %s204
      %p213 = scmp.eq.s32.totalorder %s25, 0
      %p214 = por %p212, %p213
      %p215 = scmp.ne.s32.totalorder %s203, %s204
      %p216 = scmp.eq.s32.totalorder %s26, 7
      %p217 = por %p215, %p216
      %p219 = scmp.ne.s32.totalorder %s204, %s218
      %p220 = scmp.eq.s32.totalorder %s26, 0
      %p221 = por %p219, %p220
      %s223 = sadd.s32 %s222, 1
      %p226 = scmp.eq.s32.totalorder %s20, 7
      %p227 = scmp.ne.s32.totalorder %s222, %s224
      %p228 = scmp.eq.s32.totalorder %s20, 0
      %p229 = por %p227, %p228
      %p230 = scmp.ne.s32.totalorder %s222, %s224
      %p231 = scmp.eq.s32.totalorder %s25, 7
      %p232 = por %p230, %p231
      %p233 = scmp.ne.s32.totalorder %s224, %s225
      %p234 = scmp.eq.s32.totalorder %s25, 0
      %p235 = por %p233, %p234
      %p236 = scmp.ne.s32.totalorder %s224, %s225
      %p237 = scmp.eq.s32.totalorder %s26, 7
      %p238 = por %p236, %p237
      %p240 = scmp.ne.s32.totalorder %s225, %s239
      %p241 = scmp.eq.s32.totalorder %s26, 0
      %p242 = por %p240, %p241
      %s244 = sadd.s32 %s243, 1
      %p247 = scmp.eq.s32.totalorder %s20, 7
      %p248 = scmp.ne.s32.totalorder %s243, %s245
      %p249 = scmp.eq.s32.totalorder %s20, 0
      %p250 = por %p248, %p249
      %p251 = scmp.ne.s32.totalorder %s243, %s245
      %p252 = scmp.eq.s32.totalorder %s25, 7
      %p253 = por %p251, %p252
      %p254 = scmp.ne.s32.totalorder %s245, %s246
      %p255 = scmp.eq.s32.totalorder %s25, 0
      %p256 = por %p254, %p255
      %p257 = scmp.ne.s32.totalorder %s245, %s246
      %p258 = scmp.eq.s32.totalorder %s26, 7
      %p259 = por %p257, %p258
      %p261 = scmp.ne.s32.totalorder %s246, %s260
      %p262 = scmp.eq.s32.totalorder %s26, 0
      %p263 = por %p261, %p262
      %s264 = ssub.s32 %s20, %s27
      %p265 = scmp.eq.s32.totalorder %s264, 0
      %s267 = sadd.s32 %s266, 1
      %s268 = scalar_select %p265, %s266, %s267
      %p271 = pneg %p265
      %p272 = scmp.eq.s32.totalorder %s20, 7
      %p273 = por %p271, %p272
      %p274 = scmp.ne.s32.totalorder %s266, %s269
      %p275 = scmp.eq.s32.totalorder %s20, 0
      %p276 = por %p274, %p275
      %p277 = scmp.ne.s32.totalorder %s266, %s269
      %p278 = scmp.eq.s32.totalorder %s25, 7
      %p279 = por %p277, %p278
      %p280 = scmp.ne.s32.totalorder %s269, %s270
      %p281 = scmp.eq.s32.totalorder %s25, 0
      %p282 = por %p280, %p281
      %p283 = scmp.ne.s32.totalorder %s269, %s270
      %p284 = scmp.eq.s32.totalorder %s26, 7
      %p285 = por %p283, %p284
      %p287 = scmp.ne.s32.totalorder %s270, %s286
      %p288 = scmp.eq.s32.totalorder %s26, 0
      %p289 = por %p287, %p288
      %p290 = scmp.le.s32.totalorder 1, %s20
      %p291 = scmp.lt.s32.totalorder %s20, 9
      %p292 = pnand %p290, %p291
      %p293 = pneg %p292
      // Predicated region
      $region9: #{stgcn_forward.1} parent=5 // pred_check
        _
      $region10: #{stgcn_forward.1} parent=5 // pred_check_branch
        %295 = sbr.rel (%p292) target = $region12
      $region11: #{stgcn_forward.1} parent=5 // pred_region
        %s296 = ssub.s32 %s20, 1
        // Predicated region
        $region13: #{stgcn_forward.1} parent=11 // pred_check
          %p297 = pneg %p67
        $region14: #{stgcn_forward.1} parent=11 // pred_check_branch
          %299 = sbr.rel (%p297) target = $region16
        $region15: #{stgcn_forward.1} parent=11 // pred_region
          _
        $region16: #{stgcn_forward.1} parent=11 // pred_fallthru
          _
        // Predicated region
        $region17: #{stgcn_forward.1} parent=11 // pred_check
          %p300 = pneg %p88
        $region18: #{stgcn_forward.1} parent=11 // pred_check_branch
          %302 = sbr.rel (%p300) target = $region20
        $region19: #{stgcn_forward.1} parent=11 // pred_region
          _
        $region20: #{stgcn_forward.1} parent=11 // pred_fallthru
          _
        // Predicated region
        $region21: #{stgcn_forward.1} parent=11 // pred_check
          %p303 = pneg %p109
        $region22: #{stgcn_forward.1} parent=11 // pred_check_branch
          %305 = sbr.rel (%p303) target = $region24
        $region23: #{stgcn_forward.1} parent=11 // pred_region
          _
        $region24: #{stgcn_forward.1} parent=11 // pred_fallthru
          _
        // Predicated region
        $region25: #{stgcn_forward.1} parent=11 // pred_check
          %p306 = pneg %p130
        $region26: #{stgcn_forward.1} parent=11 // pred_check_branch
          %308 = sbr.rel (%p306) target = $region28
        $region27: #{stgcn_forward.1} parent=11 // pred_region
          _
        $region28: #{stgcn_forward.1} parent=11 // pred_fallthru
          _
        // Predicated region
        $region29: #{stgcn_forward.1} parent=11 // pred_check
          %p309 = pneg %p151
        $region30: #{stgcn_forward.1} parent=11 // pred_check_branch
          %311 = sbr.rel (%p309) target = $region32
        $region31: #{stgcn_forward.1} parent=11 // pred_region
          _
        $region32: #{stgcn_forward.1} parent=11 // pred_fallthru
          _
        // Predicated region
        $region33: #{stgcn_forward.1} parent=11 // pred_check
          %p312 = pneg %p172
        $region34: #{stgcn_forward.1} parent=11 // pred_check_branch
          %314 = sbr.rel (%p312) target = $region36
        $region35: #{stgcn_forward.1} parent=11 // pred_region
          _
        $region36: #{stgcn_forward.1} parent=11 // pred_fallthru
          _
        // Predicated region
        $region37: #{stgcn_forward.1} parent=11 // pred_check
          %p315 = pneg %p193
        $region38: #{stgcn_forward.1} parent=11 // pred_check_branch
          %317 = sbr.rel (%p315) target = $region40
        $region39: #{stgcn_forward.1} parent=11 // pred_region
          _
        $region40: #{stgcn_forward.1} parent=11 // pred_fallthru
          _
        // Predicated region
        $region41: #{stgcn_forward.1} parent=11 // pred_check
          %p318 = pneg %p214
        $region42: #{stgcn_forward.1} parent=11 // pred_check_branch
          %320 = sbr.rel (%p318) target = $region44
        $region43: #{stgcn_forward.1} parent=11 // pred_region
          _
        $region44: #{stgcn_forward.1} parent=11 // pred_fallthru
          _
        // Predicated region
        $region45: #{stgcn_forward.1} parent=11 // pred_check
          %p321 = pneg %p235
        $region46: #{stgcn_forward.1} parent=11 // pred_check_branch
          %323 = sbr.rel (%p321) target = $region48
        $region47: #{stgcn_forward.1} parent=11 // pred_region
          _
        $region48: #{stgcn_forward.1} parent=11 // pred_fallthru
          _
        // Predicated region
        $region49: #{stgcn_forward.1} parent=11 // pred_check
          %p324 = pneg %p256
        $region50: #{stgcn_forward.1} parent=11 // pred_check_branch
          %326 = sbr.rel (%p324) target = $region52
        $region51: #{stgcn_forward.1} parent=11 // pred_region
          _
        $region52: #{stgcn_forward.1} parent=11 // pred_fallthru
          _
      $region12: #{stgcn_forward.1} parent=5 // pred_fallthru
        _
      %p327 = scmp.lt.s32.totalorder %s20, 8
      // Predicated region
      $region53: #{stgcn_forward.1} parent=5 // pred_check
        %p328 = pneg %p327
      $region54: #{stgcn_forward.1} parent=5 // pred_check_branch
        %330 = sbr.rel (%p328) target = $region56
      $region55: #{stgcn_forward.1} parent=5 // pred_region
        // Predicated region
        $region57: #{stgcn_forward.1} parent=55 // pred_check
          %p331 = pneg %p40
        $region58: #{stgcn_forward.1} parent=55 // pred_check_branch
          %333 = sbr.rel (%p331) target = $region60
        $region59: #{stgcn_forward.1} parent=55 // pred_region
          %p334 = scmp.lt.s32.totalorder %s20, 7
          %s335 = scalar_select %p334, %s20, 7
          %s336 = smul.addr %s335, 16
          %s337 = smul.addr %s336, 8
          %s338 = scalar_lea.vmem %s0, %s337
        $region60: #{stgcn_forward.1} parent=55 // pred_fallthru
          _
      $region56: #{stgcn_forward.1} parent=5 // pred_fallthru
        _
      %p339 = scmp.le.s32.totalorder 1, %s20
      %p340 = scmp.lt.s32.totalorder %s20, 9
      %p341 = pnand %p339, %p340
      %p342 = pneg %p341
      // Predicated region
      $region61: #{stgcn_forward.1} parent=5 // pred_check
        _
      $region62: #{stgcn_forward.1} parent=5 // pred_check_branch
        %344 = sbr.rel (%p341) target = $region64
      $region63: #{stgcn_forward.1} parent=5 // pred_region
        %s345 = ssub.s32 %s20, 1
        %p346 = scmp.lt.s32.totalorder %s25, 7
        %s347 = scalar_select %p346, %s25, 7
        %s348 = smul.addr %s347, 16
        %s349 = smul.addr %s348, 8
        %s350 = scalar_lea.vmem %s0, %s349
        %p351 = pneg %p46
        %p352 = pneg %p43
        %p353 = pneg %p67
        %p354 = pneg %p64
        %p355 = pneg %p88
        %p356 = pneg %p85
        %p357 = pneg %p109
        %p358 = pneg %p106
        %p359 = pneg %p130
        %p360 = pneg %p127
        %p361 = pneg %p151
        %p362 = pneg %p148
        %p363 = pneg %p172
        %p364 = pneg %p169
        %p365 = pneg %p193
        %p366 = pneg %p190
        %p367 = pneg %p214
        %p368 = pneg %p211
        %p369 = pneg %p235
        %p370 = pneg %p232
        %p371 = pneg %p256
        %p372 = pneg %p253
        %p373 = pneg %p282
        %p374 = pneg %p279
        %s375 = sand.u32 %s269, 1
        %s376 = scalar_lea.sflag [#allocation3], %s375
        %s377 = sand.u32 %s269, 1
        %s378 = smul.addr %s377, 128
        %s379 = scalar_lea.vmem [#allocation2], %s378
        %p380 = scmp.lt.s32.totalorder %s25, 7
        %s381 = scalar_select %p380, %s25, 7
        %s382 = smul.addr %s381, 16
        %s383 = smul.addr %s382, 8
        %s384 = scalar_lea.vmem %s0, %s383
        %v385 = vld [vmem:[%s384] sm:$0xff]
        %v386 = vld [vmem:[%s384 + $0x8] sm:$0xff]
        %v387 = vld [vmem:[%s384 + $0x10] sm:$0xff]
        %v388 = vld [vmem:[%s384 + $0x18] sm:$0xff]
        %v389 = vld [vmem:[%s384 + $0x20] sm:$0xff]
        %v390 = vld [vmem:[%s384 + $0x28] sm:$0xff]
        %v391 = vld [vmem:[%s384 + $0x30] sm:$0xff]
        %v392 = vld [vmem:[%s384 + $0x38] sm:$0xff]
        %v393 = vld [vmem:[%s384 + $0x40] sm:$0xff]
        %v394 = vld [vmem:[%s384 + $0x48] sm:$0xff]
        %v395 = vld [vmem:[%s384 + $0x50] sm:$0xff]
        %v396 = vld [vmem:[%s384 + $0x58] sm:$0xff]
        %v397 = vld [vmem:[%s384 + $0x60] sm:$0xff]
        %v398 = vld [vmem:[%s384 + $0x68] sm:$0xff]
        %v399 = vld [vmem:[%s384 + $0x70] sm:$0xff]
        %v400 = vld [vmem:[%s384 + $0x78] sm:$0xff]
        %v401 = vld [vmem:[%s1] sm:$0xff]
        %v402 = vld [vmem:[%s1 + $0x8] sm:$0xff]
        %v403 = vld [vmem:[%s1 + $0x10] sm:$0xff]
        %v404 = vld [vmem:[%s1 + $0x18] sm:$0xff]
        %v405 = vld [vmem:[%s1 + $0x20] sm:$0xff]
        %v406 = vld [vmem:[%s1 + $0x28] sm:$0xff]
        %v407 = vld [vmem:[%s1 + $0x30] sm:$0xff]
        %v408 = vld [vmem:[%s1 + $0x38] sm:$0xff]
        %v409 = vld [vmem:[%s1 + $0x40] sm:$0xff]
        %v410 = vld [vmem:[%s1 + $0x48] sm:$0xff]
        %v411 = vld [vmem:[%s1 + $0x50] sm:$0xff]
        %v412 = vld [vmem:[%s1 + $0x58] sm:$0xff]
        %v413 = vld [vmem:[%s1 + $0x60] sm:$0xff]
        %v414 = vld [vmem:[%s1 + $0x68] sm:$0xff]
        %v415 = vld [vmem:[%s1 + $0x70] sm:$0xff]
        %v416 = vld [vmem:[%s1 + $0x78] sm:$0xff]
        %v417 = vld [vmem:[%s2] sm:$0xff]
        %v418 = vld [vmem:[%s2 + $0x8] sm:$0xff]
        %v419 = vld [vmem:[%s2 + $0x10] sm:$0xff]
        %v420 = vld [vmem:[%s2 + $0x18] sm:$0xff]
        %v421 = vld [vmem:[%s2 + $0x20] sm:$0xff]
        %v422 = vld [vmem:[%s2 + $0x28] sm:$0xff]
        %v423 = vld [vmem:[%s2 + $0x30] sm:$0xff]
        %v424 = vld [vmem:[%s2 + $0x38] sm:$0xff]
        %v425 = vld [vmem:[%s2 + $0x40] sm:$0xff]
        %v426 = vld [vmem:[%s2 + $0x48] sm:$0xff]
        %v427 = vld [vmem:[%s2 + $0x50] sm:$0xff]
        %v428 = vld [vmem:[%s2 + $0x58] sm:$0xff]
        %v429 = vld [vmem:[%s2 + $0x60] sm:$0xff]
        %v430 = vld [vmem:[%s2 + $0x68] sm:$0xff]
        %v431 = vld [vmem:[%s2 + $0x70] sm:$0xff]
        %v432 = vld [vmem:[%s2 + $0x78] sm:$0xff]
        %v433 = vld [vmem:[%s3] sm:$0xf]
        %v434 = vld [vmem:[%s4] sm:$0x1]
        %v436 = vlaneseq
        %v437 = vshrl.u32 %v436, 7
        %v438 = vsub.s32 0, %v437
        %v439 = vrot.slane %v434, %v438
        %vm441 = vcmask 31744
        %v443 = vsel %vm441, %v385, 0
        %v446 = vsel %vm441, %v386, 0
        %v449 = vsel %vm441, %v387, 0
        %v452 = vsel %vm441, %v388, 0
        %v455 = vsel %vm441, %v389, 0
        %v458 = vsel %vm441, %v390, 0
        %v461 = vsel %vm441, %v391, 0
        %v464 = vsel %vm441, %v392, 0
        %v467 = vsel %vm441, %v393, 0
        %v470 = vsel %vm441, %v394, 0
        %v473 = vsel %vm441, %v395, 0
        %v476 = vsel %vm441, %v396, 0
        %v479 = vsel %vm441, %v397, 0
        %v482 = vsel %vm441, %v398, 0
        %v485 = vsel %vm441, %v399, 0
        %v488 = vsel %vm441, %v400, 0
        %vm490 = vcmask 1043456
        %v492 = vsel %vm490, %v433, 0
        %494 = vmatprep.subr.mxu0 0.0
        %495 = vmatpush1.msra.mxu0 %v492
        %496 = vmatprep.subr.mxu0 0.0
        %497 = vmatpush1.msra.mxu0 0.0
        %498 = vmatprep.subr.mxu0 0.0
        %499 = vmatpush1.msra.mxu0 0.0
        %500 = vmatprep.subr.mxu0 0.0
        %501 = vmatpush1.msra.mxu0 0.0
        %502 = vmatprep.subr.mxu0 0.0
        %503 = vmatpush1.msra.mxu0 0.0
        %504 = vmatprep.subr.mxu0 0.0
        %505 = vmatpush1.msra.mxu0 0.0
        %506 = vmatprep.subr.mxu0 0.0
        %507 = vmatpush1.msra.mxu0 0.0
        %508 = vmatprep.subr.mxu0 0.0
        %509 = vmatpush1.msra.mxu0 0.0
        %510 = vmatprep.subr.mxu0 0.0
        %511 = vmatpush1.msra.mxu0 0.0
        %512 = vmatprep.subr.mxu0 0.0
        %513 = vmatpush1.msra.mxu0 0.0
        %514 = vmatprep.subr.mxu0 0.0
        %515 = vmatpush1.msra.mxu0 0.0
        %516 = vmatprep.subr.mxu0 0.0
        %517 = vmatpush1.msra.mxu0 0.0
        %518 = vmatprep.subr.mxu0 0.0
        %519 = vmatpush1.msra.mxu0 0.0
        %520 = vmatprep.subr.mxu0 0.0
        %521 = vmatpush1.msra.mxu0 0.0
        %522 = vmatprep.subr.mxu0 0.0
        %523 = vmatpush1.msra.mxu0 0.0
        %524 = vmatprep.subr.mxu0 0.0
        %525 = vmatpush1.msra.mxu0 0.0
        %526 = vmatprep.subr.mxu0 0.0
        %527 = vmatpush1.msra.mxu0 0.0
        %528 = vmatprep.subr.mxu0 0.0
        %529 = vmatpush1.msra.mxu0 0.0
        %530 = vmatprep.subr.mxu0 0.0
        %531 = vmatpush1.msra.mxu0 0.0
        %532 = vmatprep.subr.mxu0 0.0
        %533 = vmatpush1.msra.mxu0 0.0
        %534 = vmatprep.subr.mxu0 0.0
        %535 = vmatpush1.msra.mxu0 0.0
        %536 = vmatprep.subr.mxu0 0.0
        %537 = vmatpush1.msra.mxu0 0.0
        %538 = vmatprep.subr.mxu0 0.0
        %539 = vmatpush1.msra.mxu0 0.0
        %540 = vmatprep.subr.mxu0 0.0
        %541 = vmatpush1.msra.mxu0 0.0
        %542 = vmatprep.subr.mxu0 0.0
        %543 = vmatpush1.msra.mxu0 0.0
        %544 = vmatprep.subr.mxu0 0.0
        %545 = vmatpush1.msra.mxu0 0.0
        %546 = vmatprep.subr.mxu0 0.0
        %547 = vmatpush1.msra.mxu0 0.0
        %548 = vmatprep.subr.mxu0 0.0
        %549 = vmatpush1.msra.mxu0 0.0
        %550 = vmatprep.subr.mxu0 0.0
        %551 = vmatpush1.msra.mxu0 0.0
        %552 = vmatprep.subr.mxu0 0.0
        %553 = vmatpush1.msra.mxu0 0.0
        %554 = vmatprep.subr.mxu0 0.0
        %555 = vmatpush1.msra.mxu0 0.0
        %556 = vmatprep.subr.mxu0 0.0
        %557 = vmatpush1.msra.mxu0 0.0
        %558 = vmatprep.mubr.f32.mxu0 0.0
        %559 = vmatmul.mubr.f32.gmra.mrb[0].mxu0 %v443
        %v560 = vpop.f32.mrb[0].mxu0
        %v561 = vadd.f32 %v439, %v560
        %v562 = vpop.f32.mrb[0].mxu0
        %563 = vmatprep.mubr.f32.mxu0 0.0
        %564 = vmatmul.mubr.f32.gmra.mrb[0].mxu0 %v446
        %v565 = vpop.f32.mrb[0].mxu0
        %v566 = vadd.f32 %v439, %v565
        %v567 = vpop.f32.mrb[0].mxu0
        %568 = vmatprep.mubr.f32.mxu0 0.0
        %569 = vmatmul.mubr.f32.gmra.mrb[0].mxu0 %v449
        %v570 = vpop.f32.mrb[0].mxu0
        %v571 = vadd.f32 %v439, %v570
        %v572 = vpop.f32.mrb[0].mxu0
        %573 = vmatprep.mubr.f32.mxu0 0.0
        %574 = vmatmul.mubr.f32.gmra.mrb[0].mxu0 %v452
        %v575 = vpop.f32.mrb[0].mxu0
        %v576 = vadd.f32 %v439, %v575
        %v577 = vpop.f32.mrb[0].mxu0
        %578 = vmatprep.mubr.f32.mxu0 0.0
        %579 = vmatmul.mubr.f32.gmra.mrb[0].mxu0 %v455
        %v580 = vpop.f32.mrb[0].mxu0
        %v581 = vadd.f32 %v439, %v580
        %v582 = vpop.f32.mrb[0].mxu0
        %583 = vmatprep.mubr.f32.mxu0 0.0
        %584 = vmatmul.mubr.f32.gmra.mrb[0].mxu0 %v458
        %v585 = vpop.f32.mrb[0].mxu0
        %v586 = vadd.f32 %v439, %v585
        %v587 = vpop.f32.mrb[0].mxu0
        %588 = vmatprep.mubr.f32.mxu0 0.0
        %589 = vmatmul.mubr.f32.gmra.mrb[0].mxu0 %v461
        %v590 = vpop.f32.mrb[0].mxu0
        %v591 = vadd.f32 %v439, %v590
        %v592 = vpop.f32.mrb[0].mxu0
        %593 = vmatprep.mubr.f32.mxu0 0.0
        %594 = vmatmul.mubr.f32.gmra.mrb[0].mxu0 %v464
        %v595 = vpop.f32.mrb[0].mxu0
        %v596 = vadd.f32 %v439, %v595
        %v597 = vpop.f32.mrb[0].mxu0
        %598 = vmatprep.mubr.f32.mxu0 0.0
        %599 = vmatmul.mubr.f32.gmra.mrb[0].mxu0 %v467
        %v600 = vpop.f32.mrb[0].mxu0
        %v601 = vadd.f32 %v439, %v600
        %v602 = vpop.f32.mrb[0].mxu0
        %603 = vmatprep.mubr.f32.mxu0 0.0
        %604 = vmatmul.mubr.f32.gmra.mrb[0].mxu0 %v470
        %v605 = vpop.f32.mrb[0].mxu0
        %v606 = vadd.f32 %v439, %v605
        %v607 = vpop.f32.mrb[0].mxu0
        %608 = vmatprep.mubr.f32.mxu0 0.0
        %609 = vmatmul.mubr.f32.gmra.mrb[0].mxu0 %v473
        %v610 = vpop.f32.mrb[0].mxu0
        %v611 = vadd.f32 %v439, %v610
        %v612 = vpop.f32.mrb[0].mxu0
        %613 = vmatprep.mubr.f32.mxu0 0.0
        %614 = vmatmul.mubr.f32.gmra.mrb[0].mxu0 %v476
        %v615 = vpop.f32.mrb[0].mxu0
        %v616 = vadd.f32 %v439, %v615
        %v617 = vpop.f32.mrb[0].mxu0
        %618 = vmatprep.mubr.f32.mxu0 0.0
        %619 = vmatmul.mubr.f32.gmra.mrb[0].mxu0 %v479
        %v620 = vpop.f32.mrb[0].mxu0
        %v621 = vadd.f32 %v439, %v620
        %v622 = vpop.f32.mrb[0].mxu0
        %623 = vmatprep.mubr.f32.mxu0 0.0
        %624 = vmatmul.mubr.f32.gmra.mrb[0].mxu0 %v482
        %v625 = vpop.f32.mrb[0].mxu0
        %v626 = vadd.f32 %v439, %v625
        %v627 = vpop.f32.mrb[0].mxu0
        %628 = vmatprep.mubr.f32.mxu0 0.0
        %629 = vmatmul.mubr.f32.gmra.mrb[0].mxu0 %v485
        %v630 = vpop.f32.mrb[0].mxu0
        %v631 = vadd.f32 %v439, %v630
        %v632 = vpop.f32.mrb[0].mxu0
        %633 = vmatprep.mubr.f32.mxu0 0.0
        %634 = vmatmul.mubr.f32.gmra.mrb[0].mxu0 %v488
        %v635 = vpop.f32.mrb[0].mxu0
        %v636 = vadd.f32 %v439, %v635
        %v637 = vpop.f32.mrb[0].mxu0
        %638 = vdwg.mxu0
        %639 = vmatprep.subr.mxu0 0.0
        %640 = vmatpush1.msra.mxu0 %v561
        %641 = vmatprep.subr.mxu0 0.0
        %642 = vmatpush1.msra.mxu0 %v566
        %643 = vmatprep.subr.mxu0 0.0
        %644 = vmatpush1.msra.mxu0 %v571
        %645 = vmatprep.subr.mxu0 0.0
        %646 = vmatpush1.msra.mxu0 %v576
        %647 = vmatprep.subr.mxu0 0.0
        %648 = vmatpush1.msra.mxu0 %v581
        %649 = vmatprep.subr.mxu0 0.0
        %650 = vmatpush1.msra.mxu0 %v586
        %651 = vmatprep.subr.mxu0 0.0
        %652 = vmatpush1.msra.mxu0 %v591
        %653 = vmatprep.subr.mxu0 0.0
        %654 = vmatpush1.msra.mxu0 %v596
        %655 = vmatprep.subr.mxu0 0.0
        %656 = vmatpush1.msra.mxu0 %v601
        %657 = vmatprep.subr.mxu0 0.0
        %658 = vmatpush1.msra.mxu0 %v606
        %659 = vmatprep.subr.mxu0 0.0
        %660 = vmatpush1.msra.mxu0 %v611
        %661 = vmatprep.subr.mxu0 0.0
        %662 = vmatpush1.msra.mxu0 %v616
        %663 = vmatprep.subr.mxu0 0.0
        %664 = vmatpush1.msra.mxu0 %v621
        %665 = vmatprep.subr.mxu0 0.0
        %666 = vmatpush1.msra.mxu0 %v626
        %667 = vmatprep.subr.mxu0 0.0
        %668 = vmatpush1.msra.mxu0 %v631
        %669 = vmatprep.subr.mxu0 0.0
        %670 = vmatpush1.msra.mxu0 %v636
        %671 = vmatprep.subr.mxu0 0.0
        %672 = vmatpush1.msra.mxu0 0.0
        %673 = vmatprep.subr.mxu0 0.0
        %674 = vmatpush1.msra.mxu0 0.0
        %675 = vmatprep.subr.mxu0 0.0
        %676 = vmatpush1.msra.mxu0 0.0
        %677 = vmatprep.subr.mxu0 0.0
        %678 = vmatpush1.msra.mxu0 0.0
        %679 = vmatprep.subr.mxu0 0.0
        %680 = vmatpush1.msra.mxu0 0.0
        %681 = vmatprep.subr.mxu0 0.0
        %682 = vmatpush1.msra.mxu0 0.0
        %683 = vmatprep.subr.mxu0 0.0
        %684 = vmatpush1.msra.mxu0 0.0
        %685 = vmatprep.subr.mxu0 0.0
        %686 = vmatpush1.msra.mxu0 0.0
        %687 = vmatprep.subr.mxu0 0.0
        %688 = vmatpush1.msra.mxu0 0.0
        %689 = vmatprep.subr.mxu0 0.0
        %690 = vmatpush1.msra.mxu0 0.0
        %691 = vmatprep.subr.mxu0 0.0
        %692 = vmatpush1.msra.mxu0 0.0
        %693 = vmatprep.subr.mxu0 0.0
        %694 = vmatpush1.msra.mxu0 0.0
        %695 = vmatprep.subr.mxu0 0.0
        %696 = vmatpush1.msra.mxu0 0.0
        %697 = vmatprep.subr.mxu0 0.0
        %698 = vmatpush1.msra.mxu0 0.0
        %699 = vmatprep.subr.mxu0 0.0
        %700 = vmatpush1.msra.mxu0 0.0
        %701 = vmatprep.subr.mxu0 0.0
        %702 = vmatpush1.msra.mxu0 0.0
        %703 = vmatprep.mubr.f32.mxu0 0.0
        %704 = vmatmul.mubr.f32.gmra.mrb[0].mxu0 %v401
        %v705 = vpop.f32.mrb[0].mxu0
        %v706 = vadd.f32 0.0, %v705
        %v707 = vpop.f32.mrb[0].mxu0
        %708 = vmatprep.mubr.f32.mxu0 0.0
        %709 = vmatmul.mubr.f32.gmra.mrb[0].mxu0 %v402
        %v710 = vpop.f32.mrb[0].mxu0
        %v711 = vadd.f32 0.0, %v710
        %v712 = vpop.f32.mrb[0].mxu0
        %713 = vmatprep.mubr.f32.mxu0 0.0
        %714 = vmatmul.mubr.f32.gmra.mrb[0].mxu0 %v403
        %v715 = vpop.f32.mrb[0].mxu0
        %v716 = vadd.f32 0.0, %v715
        %v717 = vpop.f32.mrb[0].mxu0
        %718 = vmatprep.mubr.f32.mxu0 0.0
        %719 = vmatmul.mubr.f32.gmra.mrb[0].mxu0 %v404
        %v720 = vpop.f32.mrb[0].mxu0
        %v721 = vadd.f32 0.0, %v720
        %v722 = vpop.f32.mrb[0].mxu0
        %723 = vmatprep.mubr.f32.mxu0 0.0
        %724 = vmatmul.mubr.f32.gmra.mrb[0].mxu0 %v405
        %v725 = vpop.f32.mrb[0].mxu0
        %v726 = vadd.f32 0.0, %v725
        %v727 = vpop.f32.mrb[0].mxu0
        %728 = vmatprep.mubr.f32.mxu0 0.0
        %729 = vmatmul.mubr.f32.gmra.mrb[0].mxu0 %v406
        %v730 = vpop.f32.mrb[0].mxu0
        %v731 = vadd.f32 0.0, %v730
        %v732 = vpop.f32.mrb[0].mxu0
        %733 = vmatprep.mubr.f32.mxu0 0.0
        %734 = vmatmul.mubr.f32.gmra.mrb[0].mxu0 %v407
        %v735 = vpop.f32.mrb[0].mxu0
        %v736 = vadd.f32 0.0, %v735
        %v737 = vpop.f32.mrb[0].mxu0
        %738 = vmatprep.mubr.f32.mxu0 0.0
        %739 = vmatmul.mubr.f32.gmra.mrb[0].mxu0 %v408
        %v740 = vpop.f32.mrb[0].mxu0
        %v741 = vadd.f32 0.0, %v740
        %v742 = vpop.f32.mrb[0].mxu0
        %743 = vmatprep.mubr.f32.mxu0 0.0
        %744 = vmatmul.mubr.f32.gmra.mrb[0].mxu0 %v409
        %v745 = vpop.f32.mrb[0].mxu0
        %v746 = vadd.f32 0.0, %v745
        %v747 = vpop.f32.mrb[0].mxu0
        %748 = vmatprep.mubr.f32.mxu0 0.0
        %749 = vmatmul.mubr.f32.gmra.mrb[0].mxu0 %v410
        %v750 = vpop.f32.mrb[0].mxu0
        %v751 = vadd.f32 0.0, %v750
        %v752 = vpop.f32.mrb[0].mxu0
        %753 = vmatprep.mubr.f32.mxu0 0.0
        %754 = vmatmul.mubr.f32.gmra.mrb[0].mxu0 %v411
        %v755 = vpop.f32.mrb[0].mxu0
        %v756 = vadd.f32 0.0, %v755
        %v757 = vpop.f32.mrb[0].mxu0
        %758 = vmatprep.mubr.f32.mxu0 0.0
        %759 = vmatmul.mubr.f32.gmra.mrb[0].mxu0 %v412
        %v760 = vpop.f32.mrb[0].mxu0
        %v761 = vadd.f32 0.0, %v760
        %v762 = vpop.f32.mrb[0].mxu0
        %763 = vmatprep.mubr.f32.mxu0 0.0
        %764 = vmatmul.mubr.f32.gmra.mrb[0].mxu0 %v413
        %v765 = vpop.f32.mrb[0].mxu0
        %v766 = vadd.f32 0.0, %v765
        %v767 = vpop.f32.mrb[0].mxu0
        %768 = vmatprep.mubr.f32.mxu0 0.0
        %769 = vmatmul.mubr.f32.gmra.mrb[0].mxu0 %v414
        %v770 = vpop.f32.mrb[0].mxu0
        %v771 = vadd.f32 0.0, %v770
        %v772 = vpop.f32.mrb[0].mxu0
        %773 = vmatprep.mubr.f32.mxu0 0.0
        %774 = vmatmul.mubr.f32.gmra.mrb[0].mxu0 %v415
        %v775 = vpop.f32.mrb[0].mxu0
        %v776 = vadd.f32 0.0, %v775
        %v777 = vpop.f32.mrb[0].mxu0
        %778 = vmatprep.mubr.f32.mxu0 0.0
        %779 = vmatmul.mubr.f32.gmra.mrb[0].mxu0 %v416
        %v780 = vpop.f32.mrb[0].mxu0
        %v781 = vadd.f32 0.0, %v780
        %v782 = vpop.f32.mrb[0].mxu0
        %783 = vdwg.mxu0
        %v784 = vmax.f32 %v706, 0.0
        %v785 = vmax.f32 %v711, 0.0
        %v786 = vmax.f32 %v716, 0.0
        %v787 = vmax.f32 %v721, 0.0
        %v788 = vmax.f32 %v726, 0.0
        %v789 = vmax.f32 %v731, 0.0
        %v790 = vmax.f32 %v736, 0.0
        %v791 = vmax.f32 %v741, 0.0
        %v792 = vmax.f32 %v746, 0.0
        %v793 = vmax.f32 %v751, 0.0
        %v794 = vmax.f32 %v756, 0.0
        %v795 = vmax.f32 %v761, 0.0
        %v796 = vmax.f32 %v766, 0.0
        %v797 = vmax.f32 %v771, 0.0
        %v798 = vmax.f32 %v776, 0.0
        %v799 = vmax.f32 %v781, 0.0
        %v800 = vld [vmem:[%s5] sm:$0xff]
        %v801 = vld [vmem:[%s5 + $0x8] sm:$0xff]
        %v802 = vld [vmem:[%s5 + $0x10] sm:$0xff]
        %v803 = vld [vmem:[%s5 + $0x18] sm:$0xff]
        %v804 = vld [vmem:[%s5 + $0x20] sm:$0xff]
        %v805 = vld [vmem:[%s5 + $0x28] sm:$0xff]
        %v806 = vld [vmem:[%s5 + $0x30] sm:$0xff]
        %v807 = vld [vmem:[%s5 + $0x38] sm:$0xff]
        %v808 = vld [vmem:[%s6] sm:$0x1]
        %v810 = vlaneseq
        %v811 = vshrl.u32 %v810, 7
        %v812 = vsub.s32 0, %v811
        %v813 = vrot.slane %v808, %v812
        %vm815 = vcmask 523264
        %v817 = vsel %vm815, %v784, 0
        %v820 = vsel %vm815, %v785, 0
        %v823 = vsel %vm815, %v786, 0
        %v826 = vsel %vm815, %v787, 0
        %v829 = vsel %vm815, %v788, 0
        %v832 = vsel %vm815, %v789, 0
        %v835 = vsel %vm815, %v790, 0
        %v838 = vsel %vm815, %v791, 0
        %v841 = vsel %vm815, %v792, 0
        %v844 = vsel %vm815, %v793, 0
        %v847 = vsel %vm815, %v794, 0
        %v850 = vsel %vm815, %v795, 0
        %v853 = vsel %vm815, %v796, 0
        %v856 = vsel %vm815, %v797, 0
        %v859 = vsel %vm815, %v798, 0
        %v862 = vsel %vm815, %v799, 0
        %864 = vmatprep.subr.mxu0 0.0
        %865 = vmatpush1.msra.mxu0 %v800
        %866 = vmatprep.subr.mxu0 0.0
        %867 = vmatpush1.msra.mxu0 %v801
        %868 = vmatprep.subr.mxu0 0.0
        %869 = vmatpush1.msra.mxu0 %v802
        %870 = vmatprep.subr.mxu0 0.0
        %871 = vmatpush1.msra.mxu0 %v803
        %872 = vmatprep.subr.mxu0 0.0
        %873 = vmatpush1.msra.mxu0 %v804
        %874 = vmatprep.subr.mxu0 0.0
        %875 = vmatpush1.msra.mxu0 %v805
        %876 = vmatprep.subr.mxu0 0.0
        %877 = vmatpush1.msra.mxu0 %v806
        %878 = vmatprep.subr.mxu0 0.0
        %879 = vmatpush1.msra.mxu0 %v807
        %880 = vmatprep.subr.mxu0 0.0
        %881 = vmatpush1.msra.mxu0 0.0
        %882 = vmatprep.subr.mxu0 0.0
        %883 = vmatpush1.msra.mxu0 0.0
        %884 = vmatprep.subr.mxu0 0.0
        %885 = vmatpush1.msra.mxu0 0.0
        %886 = vmatprep.subr.mxu0 0.0
        %887 = vmatpush1.msra.mxu0 0.0
        %888 = vmatprep.subr.mxu0 0.0
        %889 = vmatpush1.msra.mxu0 0.0
        %890 = vmatprep.subr.mxu0 0.0
        %891 = vmatpush1.msra.mxu0 0.0
        %892 = vmatprep.subr.mxu0 0.0
        %893 = vmatpush1.msra.mxu0 0.0
        %894 = vmatprep.subr.mxu0 0.0
        %895 = vmatpush1.msra.mxu0 0.0
        %896 = vmatprep.subr.mxu0 0.0
        %897 = vmatpush1.msra.mxu0 0.0
        %898 = vmatprep.subr.mxu0 0.0
        %899 = vmatpush1.msra.mxu0 0.0
        %900 = vmatprep.subr.mxu0 0.0
        %901 = vmatpush1.msra.mxu0 0.0
        %902 = vmatprep.subr.mxu0 0.0
        %903 = vmatpush1.msra.mxu0 0.0
        %904 = vmatprep.subr.mxu0 0.0
        %905 = vmatpush1.msra.mxu0 0.0
        %906 = vmatprep.subr.mxu0 0.0
        %907 = vmatpush1.msra.mxu0 0.0
        %908 = vmatprep.subr.mxu0 0.0
        %909 = vmatpush1.msra.mxu0 0.0
        %910 = vmatprep.subr.mxu0 0.0
        %911 = vmatpush1.msra.mxu0 0.0
        %912 = vmatprep.subr.mxu0 0.0
        %913 = vmatpush1.msra.mxu0 0.0
        %914 = vmatprep.subr.mxu0 0.0
        %915 = vmatpush1.msra.mxu0 0.0
        %916 = vmatprep.subr.mxu0 0.0
        %917 = vmatpush1.msra.mxu0 0.0
        %918 = vmatprep.subr.mxu0 0.0
        %919 = vmatpush1.msra.mxu0 0.0
        %920 = vmatprep.subr.mxu0 0.0
        %921 = vmatpush1.msra.mxu0 0.0
        %922 = vmatprep.subr.mxu0 0.0
        %923 = vmatpush1.msra.mxu0 0.0
        %924 = vmatprep.subr.mxu0 0.0
        %925 = vmatpush1.msra.mxu0 0.0
        %926 = vmatprep.subr.mxu0 0.0
        %927 = vmatpush1.msra.mxu0 0.0
        %928 = vmatprep.mubr.f32.mxu0 0.0
        %929 = vmatmul.mubr.f32.gmra.mrb[0].mxu0 %v817
        %v930 = vpop.f32.mrb[0].mxu0
        %v931 = vadd.f32 %v813, %v930
        %v932 = vpop.f32.mrb[0].mxu0
        %933 = vmatprep.mubr.f32.mxu0 0.0
        %934 = vmatmul.mubr.f32.gmra.mrb[0].mxu0 %v820
        %v935 = vpop.f32.mrb[0].mxu0
        %v936 = vadd.f32 %v813, %v935
        %v937 = vpop.f32.mrb[0].mxu0
        %938 = vmatprep.mubr.f32.mxu0 0.0
        %939 = vmatmul.mubr.f32.gmra.mrb[0].mxu0 %v823
        %v940 = vpop.f32.mrb[0].mxu0
        %v941 = vadd.f32 %v813, %v940
        %v942 = vpop.f32.mrb[0].mxu0
        %943 = vmatprep.mubr.f32.mxu0 0.0
        %944 = vmatmul.mubr.f32.gmra.mrb[0].mxu0 %v826
        %v945 = vpop.f32.mrb[0].mxu0
        %v946 = vadd.f32 %v813, %v945
        %v947 = vpop.f32.mrb[0].mxu0
        %948 = vmatprep.mubr.f32.mxu0 0.0
        %949 = vmatmul.mubr.f32.gmra.mrb[0].mxu0 %v829
        %v950 = vpop.f32.mrb[0].mxu0
        %v951 = vadd.f32 %v813, %v950
        %v952 = vpop.f32.mrb[0].mxu0
        %953 = vmatprep.mubr.f32.mxu0 0.0
        %954 = vmatmul.mubr.f32.gmra.mrb[0].mxu0 %v832
        %v955 = vpop.f32.mrb[0].mxu0
        %v956 = vadd.f32 %v813, %v955
        %v957 = vpop.f32.mrb[0].mxu0
        %958 = vmatprep.mubr.f32.mxu0 0.0
        %959 = vmatmul.mubr.f32.gmra.mrb[0].mxu0 %v835
        %v960 = vpop.f32.mrb[0].mxu0
        %v961 = vadd.f32 %v813, %v960
        %v962 = vpop.f32.mrb[0].mxu0
        %963 = vmatprep.mubr.f32.mxu0 0.0
        %964 = vmatmul.mubr.f32.gmra.mrb[0].mxu0 %v838
        %v965 = vpop.f32.mrb[0].mxu0
        %v966 = vadd.f32 %v813, %v965
        %v967 = vpop.f32.mrb[0].mxu0
        %968 = vmatprep.mubr.f32.mxu0 0.0
        %969 = vmatmul.mubr.f32.gmra.mrb[0].mxu0 %v841
        %v970 = vpop.f32.mrb[0].mxu0
        %v971 = vadd.f32 %v813, %v970
        %v972 = vpop.f32.mrb[0].mxu0
        %973 = vmatprep.mubr.f32.mxu0 0.0
        %974 = vmatmul.mubr.f32.gmra.mrb[0].mxu0 %v844
        %v975 = vpop.f32.mrb[0].mxu0
        %v976 = vadd.f32 %v813, %v975
        %v977 = vpop.f32.mrb[0].mxu0
        %978 = vmatprep.mubr.f32.mxu0 0.0
        %979 = vmatmul.mubr.f32.gmra.mrb[0].mxu0 %v847
        %v980 = vpop.f32.mrb[0].mxu0
        %v981 = vadd.f32 %v813, %v980
        %v982 = vpop.f32.mrb[0].mxu0
        %983 = vmatprep.mubr.f32.mxu0 0.0
        %984 = vmatmul.mubr.f32.gmra.mrb[0].mxu0 %v850
        %v985 = vpop.f32.mrb[0].mxu0
        %v986 = vadd.f32 %v813, %v985
        %v987 = vpop.f32.mrb[0].mxu0
        %988 = vmatprep.mubr.f32.mxu0 0.0
        %989 = vmatmul.mubr.f32.gmra.mrb[0].mxu0 %v853
        %v990 = vpop.f32.mrb[0].mxu0
        %v991 = vadd.f32 %v813, %v990
        %v992 = vpop.f32.mrb[0].mxu0
        %993 = vmatprep.mubr.f32.mxu0 0.0
        %994 = vmatmul.mubr.f32.gmra.mrb[0].mxu0 %v856
        %v995 = vpop.f32.mrb[0].mxu0
        %v996 = vadd.f32 %v813, %v995
        %v997 = vpop.f32.mrb[0].mxu0
        %998 = vmatprep.mubr.f32.mxu0 0.0
        %999 = vmatmul.mubr.f32.gmra.mrb[0].mxu0 %v859
        %v1000 = vpop.f32.mrb[0].mxu0
        %v1001 = vadd.f32 %v813, %v1000
        %v1002 = vpop.f32.mrb[0].mxu0
        %1003 = vmatprep.mubr.f32.mxu0 0.0
        %1004 = vmatmul.mubr.f32.gmra.mrb[0].mxu0 %v862
        %v1005 = vpop.f32.mrb[0].mxu0
        %v1006 = vadd.f32 %v813, %v1005
        %v1007 = vpop.f32.mrb[0].mxu0
        %1008 = vdwg.mxu0
        %1009 = vmatprep.subr.mxu0 0.0
        %1010 = vmatpush1.msra.mxu0 %v931
        %1011 = vmatprep.subr.mxu0 0.0
        %1012 = vmatpush1.msra.mxu0 %v936
        %1013 = vmatprep.subr.mxu0 0.0
        %1014 = vmatpush1.msra.mxu0 %v941
        %1015 = vmatprep.subr.mxu0 0.0
        %1016 = vmatpush1.msra.mxu0 %v946
        %1017 = vmatprep.subr.mxu0 0.0
        %1018 = vmatpush1.msra.mxu0 %v951
        %1019 = vmatprep.subr.mxu0 0.0
        %1020 = vmatpush1.msra.mxu0 %v956
        %1021 = vmatprep.subr.mxu0 0.0
        %1022 = vmatpush1.msra.mxu0 %v961
        %1023 = vmatprep.subr.mxu0 0.0
        %1024 = vmatpush1.msra.mxu0 %v966
        %1025 = vmatprep.subr.mxu0 0.0
        %1026 = vmatpush1.msra.mxu0 %v971
        %1027 = vmatprep.subr.mxu0 0.0
        %1028 = vmatpush1.msra.mxu0 %v976
        %1029 = vmatprep.subr.mxu0 0.0
        %1030 = vmatpush1.msra.mxu0 %v981
        %1031 = vmatprep.subr.mxu0 0.0
        %1032 = vmatpush1.msra.mxu0 %v986
        %1033 = vmatprep.subr.mxu0 0.0
        %1034 = vmatpush1.msra.mxu0 %v991
        %1035 = vmatprep.subr.mxu0 0.0
        %1036 = vmatpush1.msra.mxu0 %v996
        %1037 = vmatprep.subr.mxu0 0.0
        %1038 = vmatpush1.msra.mxu0 %v1001
        %1039 = vmatprep.subr.mxu0 0.0
        %1040 = vmatpush1.msra.mxu0 %v1006
        %1041 = vmatprep.subr.mxu0 0.0
        %1042 = vmatpush1.msra.mxu0 0.0
        %1043 = vmatprep.subr.mxu0 0.0
        %1044 = vmatpush1.msra.mxu0 0.0
        %1045 = vmatprep.subr.mxu0 0.0
        %1046 = vmatpush1.msra.mxu0 0.0
        %1047 = vmatprep.subr.mxu0 0.0
        %1048 = vmatpush1.msra.mxu0 0.0
        %1049 = vmatprep.subr.mxu0 0.0
        %1050 = vmatpush1.msra.mxu0 0.0
        %1051 = vmatprep.subr.mxu0 0.0
        %1052 = vmatpush1.msra.mxu0 0.0
        %1053 = vmatprep.subr.mxu0 0.0
        %1054 = vmatpush1.msra.mxu0 0.0
        %1055 = vmatprep.subr.mxu0 0.0
        %1056 = vmatpush1.msra.mxu0 0.0
        %1057 = vmatprep.subr.mxu0 0.0
        %1058 = vmatpush1.msra.mxu0 0.0
        %1059 = vmatprep.subr.mxu0 0.0
        %1060 = vmatpush1.msra.mxu0 0.0
        %1061 = vmatprep.subr.mxu0 0.0
        %1062 = vmatpush1.msra.mxu0 0.0
        %1063 = vmatprep.subr.mxu0 0.0
        %1064 = vmatpush1.msra.mxu0 0.0
        %1065 = vmatprep.subr.mxu0 0.0
        %1066 = vmatpush1.msra.mxu0 0.0
        %1067 = vmatprep.subr.mxu0 0.0
        %1068 = vmatpush1.msra.mxu0 0.0
        %1069 = vmatprep.subr.mxu0 0.0
        %1070 = vmatpush1.msra.mxu0 0.0
        %1071 = vmatprep.subr.mxu0 0.0
        %1072 = vmatpush1.msra.mxu0 0.0
        %1073 = vmatprep.mubr.f32.mxu0 0.0
        %1074 = vmatmul.mubr.f32.gmra.mrb[0].mxu0 %v401
        %v1075 = vpop.f32.mrb[0].mxu0
        %v1076 = vadd.f32 0.0, %v1075
        %v1077 = vpop.f32.mrb[0].mxu0
        %1078 = vmatprep.mubr.f32.mxu0 0.0
        %1079 = vmatmul.mubr.f32.gmra.mrb[0].mxu0 %v402
        %v1080 = vpop.f32.mrb[0].mxu0
        %v1081 = vadd.f32 0.0, %v1080
        %v1082 = vpop.f32.mrb[0].mxu0
        %1083 = vmatprep.mubr.f32.mxu0 0.0
        %1084 = vmatmul.mubr.f32.gmra.mrb[0].mxu0 %v403
        %v1085 = vpop.f32.mrb[0].mxu0
        %v1086 = vadd.f32 0.0, %v1085
        %v1087 = vpop.f32.mrb[0].mxu0
        %1088 = vmatprep.mubr.f32.mxu0 0.0
        %1089 = vmatmul.mubr.f32.gmra.mrb[0].mxu0 %v404
        %v1090 = vpop.f32.mrb[0].mxu0
        %v1091 = vadd.f32 0.0, %v1090
        %v1092 = vpop.f32.mrb[0].mxu0
        %1093 = vmatprep.mubr.f32.mxu0 0.0
        %1094 = vmatmul.mubr.f32.gmra.mrb[0].mxu0 %v405
        %v1095 = vpop.f32.mrb[0].mxu0
        %v1096 = vadd.f32 0.0, %v1095
        %v1097 = vpop.f32.mrb[0].mxu0
        %1098 = vmatprep.mubr.f32.mxu0 0.0
        %1099 = vmatmul.mubr.f32.gmra.mrb[0].mxu0 %v406
        %v1100 = vpop.f32.mrb[0].mxu0
        %v1101 = vadd.f32 0.0, %v1100
        %v1102 = vpop.f32.mrb[0].mxu0
        %1103 = vmatprep.mubr.f32.mxu0 0.0
        %1104 = vmatmul.mubr.f32.gmra.mrb[0].mxu0 %v407
        %v1105 = vpop.f32.mrb[0].mxu0
        %v1106 = vadd.f32 0.0, %v1105
        %v1107 = vpop.f32.mrb[0].mxu0
        %1108 = vmatprep.mubr.f32.mxu0 0.0
        %1109 = vmatmul.mubr.f32.gmra.mrb[0].mxu0 %v408
        %v1110 = vpop.f32.mrb[0].mxu0
        %v1111 = vadd.f32 0.0, %v1110
        %v1112 = vpop.f32.mrb[0].mxu0
        %1113 = vmatprep.mubr.f32.mxu0 0.0
        %1114 = vmatmul.mubr.f32.gmra.mrb[0].mxu0 %v409
        %v1115 = vpop.f32.mrb[0].mxu0
        %v1116 = vadd.f32 0.0, %v1115
        %v1117 = vpop.f32.mrb[0].mxu0
        %1118 = vmatprep.mubr.f32.mxu0 0.0
        %1119 = vmatmul.mubr.f32.gmra.mrb[0].mxu0 %v410
        %v1120 = vpop.f32.mrb[0].mxu0
        %v1121 = vadd.f32 0.0, %v1120
        %v1122 = vpop.f32.mrb[0].mxu0
        %1123 = vmatprep.mubr.f32.mxu0 0.0
        %1124 = vmatmul.mubr.f32.gmra.mrb[0].mxu0 %v411
        %v1125 = vpop.f32.mrb[0].mxu0
        %v1126 = vadd.f32 0.0, %v1125
        %v1127 = vpop.f32.mrb[0].mxu0
        %1128 = vmatprep.mubr.f32.mxu0 0.0
        %1129 = vmatmul.mubr.f32.gmra.mrb[0].mxu0 %v412
        %v1130 = vpop.f32.mrb[0].mxu0
        %v1131 = vadd.f32 0.0, %v1130
        %v1132 = vpop.f32.mrb[0].mxu0
        %1133 = vmatprep.mubr.f32.mxu0 0.0
        %1134 = vmatmul.mubr.f32.gmra.mrb[0].mxu0 %v413
        %v1135 = vpop.f32.mrb[0].mxu0
        %v1136 = vadd.f32 0.0, %v1135
        %v1137 = vpop.f32.mrb[0].mxu0
        %1138 = vmatprep.mubr.f32.mxu0 0.0
        %1139 = vmatmul.mubr.f32.gmra.mrb[0].mxu0 %v414
        %v1140 = vpop.f32.mrb[0].mxu0
        %v1141 = vadd.f32 0.0, %v1140
        %v1142 = vpop.f32.mrb[0].mxu0
        %1143 = vmatprep.mubr.f32.mxu0 0.0
        %1144 = vmatmul.mubr.f32.gmra.mrb[0].mxu0 %v415
        %v1145 = vpop.f32.mrb[0].mxu0
        %v1146 = vadd.f32 0.0, %v1145
        %v1147 = vpop.f32.mrb[0].mxu0
        %1148 = vmatprep.mubr.f32.mxu0 0.0
        %1149 = vmatmul.mubr.f32.gmra.mrb[0].mxu0 %v416
        %v1150 = vpop.f32.mrb[0].mxu0
        %v1151 = vadd.f32 0.0, %v1150
        %v1152 = vpop.f32.mrb[0].mxu0
        %1153 = vdwg.mxu0
        %v1154 = vld [vmem:[%s7] sm:$0xff]
        %v1155 = vld [vmem:[%s7 + $0x8] sm:$0xff]
        %v1156 = vld [vmem:[%s7 + $0x10] sm:$0xff]
        %v1157 = vld [vmem:[%s7 + $0x18] sm:$0xff]
        %v1158 = vld [vmem:[%s8] sm:$0x1]
        %v1160 = vlaneseq
        %v1161 = vshrl.u32 %v1160, 7
        %v1162 = vsub.s32 0, %v1161
        %v1163 = vrot.slane %v1158, %v1162
        %vm1165 = vcmask 261120
        %v1167 = vsel %vm1165, %v1076, 0
        %v1170 = vsel %vm1165, %v1081, 0
        %v1173 = vsel %vm1165, %v1086, 0
        %v1176 = vsel %vm1165, %v1091, 0
        %v1179 = vsel %vm1165, %v1096, 0
        %v1182 = vsel %vm1165, %v1101, 0
        %v1185 = vsel %vm1165, %v1106, 0
        %v1188 = vsel %vm1165, %v1111, 0
        %v1191 = vsel %vm1165, %v1116, 0
        %v1194 = vsel %vm1165, %v1121, 0
        %v1197 = vsel %vm1165, %v1126, 0
        %v1200 = vsel %vm1165, %v1131, 0
        %v1203 = vsel %vm1165, %v1136, 0
        %v1206 = vsel %vm1165, %v1141, 0
        %v1209 = vsel %vm1165, %v1146, 0
        %v1212 = vsel %vm1165, %v1151, 0
        %1214 = vmatprep.subr.mxu0 0.0
        %1215 = vmatpush1.msra.mxu0 %v1154
        %1216 = vmatprep.subr.mxu0 0.0
        %1217 = vmatpush1.msra.mxu0 %v1155
        %1218 = vmatprep.subr.mxu0 0.0
        %1219 = vmatpush1.msra.mxu0 %v1156
        %1220 = vmatprep.subr.mxu0 0.0
        %1221 = vmatpush1.msra.mxu0 %v1157
        %1222 = vmatprep.subr.mxu0 0.0
        %1223 = vmatpush1.msra.mxu0 0.0
        %1224 = vmatprep.subr.mxu0 0.0
        %1225 = vmatpush1.msra.mxu0 0.0
        %1226 = vmatprep.subr.mxu0 0.0
        %1227 = vmatpush1.msra.mxu0 0.0
        %1228 = vmatprep.subr.mxu0 0.0
        %1229 = vmatpush1.msra.mxu0 0.0
        %1230 = vmatprep.subr.mxu0 0.0
        %1231 = vmatpush1.msra.mxu0 0.0
        %1232 = vmatprep.subr.mxu0 0.0
        %1233 = vmatpush1.msra.mxu0 0.0
        %1234 = vmatprep.subr.mxu0 0.0
        %1235 = vmatpush1.msra.mxu0 0.0
        %1236 = vmatprep.subr.mxu0 0.0
        %1237 = vmatpush1.msra.mxu0 0.0
        %1238 = vmatprep.subr.mxu0 0.0
        %1239 = vmatpush1.msra.mxu0 0.0
        %1240 = vmatprep.subr.mxu0 0.0
        %1241 = vmatpush1.msra.mxu0 0.0
        %1242 = vmatprep.subr.mxu0 0.0
        %1243 = vmatpush1.msra.mxu0 0.0
        %1244 = vmatprep.subr.mxu0 0.0
        %1245 = vmatpush1.msra.mxu0 0.0
        %1246 = vmatprep.subr.mxu0 0.0
        %1247 = vmatpush1.msra.mxu0 0.0
        %1248 = vmatprep.subr.mxu0 0.0
        %1249 = vmatpush1.msra.mxu0 0.0
        %1250 = vmatprep.subr.mxu0 0.0
        %1251 = vmatpush1.msra.mxu0 0.0
        %1252 = vmatprep.subr.mxu0 0.0
        %1253 = vmatpush1.msra.mxu0 0.0
        %1254 = vmatprep.subr.mxu0 0.0
        %1255 = vmatpush1.msra.mxu0 0.0
        %1256 = vmatprep.subr.mxu0 0.0
        %1257 = vmatpush1.msra.mxu0 0.0
        %1258 = vmatprep.subr.mxu0 0.0
        %1259 = vmatpush1.msra.mxu0 0.0
        %1260 = vmatprep.subr.mxu0 0.0
        %1261 = vmatpush1.msra.mxu0 0.0
        %1262 = vmatprep.subr.mxu0 0.0
        %1263 = vmatpush1.msra.mxu0 0.0
        %1264 = vmatprep.subr.mxu0 0.0
        %1265 = vmatpush1.msra.mxu0 0.0
        %1266 = vmatprep.subr.mxu0 0.0
        %1267 = vmatpush1.msra.mxu0 0.0
        %1268 = vmatprep.subr.mxu0 0.0
        %1269 = vmatpush1.msra.mxu0 0.0
        %1270 = vmatprep.subr.mxu0 0.0
        %1271 = vmatpush1.msra.mxu0 0.0
        %1272 = vmatprep.subr.mxu0 0.0
        %1273 = vmatpush1.msra.mxu0 0.0
        %1274 = vmatprep.subr.mxu0 0.0
        %1275 = vmatpush1.msra.mxu0 0.0
        %1276 = vmatprep.subr.mxu0 0.0
        %1277 = vmatpush1.msra.mxu0 0.0
        %1278 = vmatprep.mubr.f32.mxu0 0.0
        %1279 = vmatmul.mubr.f32.gmra.mrb[0].mxu0 %v1167
        %v1280 = vpop.f32.mrb[0].mxu0
        %v1281 = vadd.f32 %v1163, %v1280
        %v1282 = vpop.f32.mrb[0].mxu0
        %1283 = vmatprep.mubr.f32.mxu0 0.0
        %1284 = vmatmul.mubr.f32.gmra.mrb[0].mxu0 %v1170
        %v1285 = vpop.f32.mrb[0].mxu0
        %v1286 = vadd.f32 %v1163, %v1285
        %v1287 = vpop.f32.mrb[0].mxu0
        %1288 = vmatprep.mubr.f32.mxu0 0.0
        %1289 = vmatmul.mubr.f32.gmra.mrb[0].mxu0 %v1173
        %v1290 = vpop.f32.mrb[0].mxu0
        %v1291 = vadd.f32 %v1163, %v1290
        %v1292 = vpop.f32.mrb[0].mxu0
        %1293 = vmatprep.mubr.f32.mxu0 0.0
        %1294 = vmatmul.mubr.f32.gmra.mrb[0].mxu0 %v1176
        %v1295 = vpop.f32.mrb[0].mxu0
        %v1296 = vadd.f32 %v1163, %v1295
        %v1297 = vpop.f32.mrb[0].mxu0
        %1298 = vmatprep.mubr.f32.mxu0 0.0
        %1299 = vmatmul.mubr.f32.gmra.mrb[0].mxu0 %v1179
        %v1300 = vpop.f32.mrb[0].mxu0
        %v1301 = vadd.f32 %v1163, %v1300
        %v1302 = vpop.f32.mrb[0].mxu0
        %1303 = vmatprep.mubr.f32.mxu0 0.0
        %1304 = vmatmul.mubr.f32.gmra.mrb[0].mxu0 %v1182
        %v1305 = vpop.f32.mrb[0].mxu0
        %v1306 = vadd.f32 %v1163, %v1305
        %v1307 = vpop.f32.mrb[0].mxu0
        %1308 = vmatprep.mubr.f32.mxu0 0.0
        %1309 = vmatmul.mubr.f32.gmra.mrb[0].mxu0 %v1185
        %v1310 = vpop.f32.mrb[0].mxu0
        %v1311 = vadd.f32 %v1163, %v1310
        %v1312 = vpop.f32.mrb[0].mxu0
        %1313 = vmatprep.mubr.f32.mxu0 0.0
        %1314 = vmatmul.mubr.f32.gmra.mrb[0].mxu0 %v1188
        %v1315 = vpop.f32.mrb[0].mxu0
        %v1316 = vadd.f32 %v1163, %v1315
        %v1317 = vpop.f32.mrb[0].mxu0
        %1318 = vmatprep.mubr.f32.mxu0 0.0
        %1319 = vmatmul.mubr.f32.gmra.mrb[0].mxu0 %v1191
        %v1320 = vpop.f32.mrb[0].mxu0
        %v1321 = vadd.f32 %v1163, %v1320
        %v1322 = vpop.f32.mrb[0].mxu0
        %1323 = vmatprep.mubr.f32.mxu0 0.0
        %1324 = vmatmul.mubr.f32.gmra.mrb[0].mxu0 %v1194
        %v1325 = vpop.f32.mrb[0].mxu0
        %v1326 = vadd.f32 %v1163, %v1325
        %v1327 = vpop.f32.mrb[0].mxu0
        %1328 = vmatprep.mubr.f32.mxu0 0.0
        %1329 = vmatmul.mubr.f32.gmra.mrb[0].mxu0 %v1197
        %v1330 = vpop.f32.mrb[0].mxu0
        %v1331 = vadd.f32 %v1163, %v1330
        %v1332 = vpop.f32.mrb[0].mxu0
        %1333 = vmatprep.mubr.f32.mxu0 0.0
        %1334 = vmatmul.mubr.f32.gmra.mrb[0].mxu0 %v1200
        %v1335 = vpop.f32.mrb[0].mxu0
        %v1336 = vadd.f32 %v1163, %v1335
        %v1337 = vpop.f32.mrb[0].mxu0
        %1338 = vmatprep.mubr.f32.mxu0 0.0
        %1339 = vmatmul.mubr.f32.gmra.mrb[0].mxu0 %v1203
        %v1340 = vpop.f32.mrb[0].mxu0
        %v1341 = vadd.f32 %v1163, %v1340
        %v1342 = vpop.f32.mrb[0].mxu0
        %1343 = vmatprep.mubr.f32.mxu0 0.0
        %1344 = vmatmul.mubr.f32.gmra.mrb[0].mxu0 %v1206
        %v1345 = vpop.f32.mrb[0].mxu0
        %v1346 = vadd.f32 %v1163, %v1345
        %v1347 = vpop.f32.mrb[0].mxu0
        %1348 = vmatprep.mubr.f32.mxu0 0.0
        %1349 = vmatmul.mubr.f32.gmra.mrb[0].mxu0 %v1209
        %v1350 = vpop.f32.mrb[0].mxu0
        %v1351 = vadd.f32 %v1163, %v1350
        %v1352 = vpop.f32.mrb[0].mxu0
        %1353 = vmatprep.mubr.f32.mxu0 0.0
        %1354 = vmatmul.mubr.f32.gmra.mrb[0].mxu0 %v1212
        %v1355 = vpop.f32.mrb[0].mxu0
        %v1356 = vadd.f32 %v1163, %v1355
        %v1357 = vpop.f32.mrb[0].mxu0
        %1358 = vdwg.mxu0
        %1375 = vrot.lane.b32.xlu0 %v1281, 96
        %v1376 = vpop.permute.xlu0 %1375
        %1377 = vrot.lane.b32.xlu0 %v1286, 96
        %v1378 = vpop.permute.xlu0 %1377
        %1379 = vrot.lane.b32.xlu0 %v1291, 96
        %v1380 = vpop.permute.xlu0 %1379
        %1381 = vrot.lane.b32.xlu0 %v1296, 96
        %v1382 = vpop.permute.xlu0 %1381
        %1383 = vrot.lane.b32.xlu0 %v1301, 96
        %v1384 = vpop.permute.xlu0 %1383
        %1385 = vrot.lane.b32.xlu0 %v1306, 96
        %v1386 = vpop.permute.xlu0 %1385
        %1387 = vrot.lane.b32.xlu0 %v1311, 96
        %v1388 = vpop.permute.xlu0 %1387
        %1389 = vrot.lane.b32.xlu0 %v1316, 96
        %v1390 = vpop.permute.xlu0 %1389
        %1391 = vrot.lane.b32.xlu0 %v1321, 96
        %v1392 = vpop.permute.xlu0 %1391
        %1393 = vrot.lane.b32.xlu0 %v1326, 96
        %v1394 = vpop.permute.xlu0 %1393
        %1395 = vrot.lane.b32.xlu0 %v1331, 96
        %v1396 = vpop.permute.xlu0 %1395
        %1397 = vrot.lane.b32.xlu0 %v1336, 96
        %v1398 = vpop.permute.xlu0 %1397
        %1399 = vrot.lane.b32.xlu0 %v1341, 96
        %v1400 = vpop.permute.xlu0 %1399
        %1401 = vrot.lane.b32.xlu0 %v1346, 96
        %v1402 = vpop.permute.xlu0 %1401
        %1403 = vrot.lane.b32.xlu0 %v1351, 96
        %v1404 = vpop.permute.xlu0 %1403
        %1405 = vrot.lane.b32.xlu0 %v1356, 96
        %v1406 = vpop.permute.xlu0 %1405
        %v1407 = vsel %vm1165, %v1281, 0
        %v1409 = vsel %vm1165, %v1286, 0
        %v1411 = vsel %vm1165, %v1291, 0
        %v1413 = vsel %vm1165, %v1296, 0
        %v1415 = vsel %vm1165, %v1301, 0
        %v1417 = vsel %vm1165, %v1306, 0
        %v1419 = vsel %vm1165, %v1311, 0
        %v1421 = vsel %vm1165, %v1316, 0
        %v1423 = vsel %vm1165, %v1321, 0
        %v1425 = vsel %vm1165, %v1326, 0
        %v1427 = vsel %vm1165, %v1331, 0
        %v1429 = vsel %vm1165, %v1336, 0
        %v1431 = vsel %vm1165, %v1341, 0
        %v1433 = vsel %vm1165, %v1346, 0
        %v1435 = vsel %vm1165, %v1351, 0
        %v1437 = vsel %vm1165, %v1356, 0
        %v1439 = vsel %vm1165, %v1376, 0
        %v1441 = vsel %vm1165, %v1378, 0
        %v1443 = vsel %vm1165, %v1380, 0
        %v1445 = vsel %vm1165, %v1382, 0
        %v1447 = vsel %vm1165, %v1384, 0
        %v1449 = vsel %vm1165, %v1386, 0
        %v1451 = vsel %vm1165, %v1388, 0
        %v1453 = vsel %vm1165, %v1390, 0
        %v1455 = vsel %vm1165, %v1392, 0
        %v1457 = vsel %vm1165, %v1394, 0
        %v1459 = vsel %vm1165, %v1396, 0
        %v1461 = vsel %vm1165, %v1398, 0
        %v1463 = vsel %vm1165, %v1400, 0
        %v1465 = vsel %vm1165, %v1402, 0
        %v1467 = vsel %vm1165, %v1404, 0
        %v1469 = vsel %vm1165, %v1406, 0
        %1471 = vmatprep.subr.mxu0 0.0
        %1472 = vmatpush1.xpose.msra.mxu0 %v1439
        %1473 = vmatprep.subr.mxu0 0.0
        %1474 = vmatpush1.xpose.msra.mxu0 %v1441
        %1475 = vmatprep.subr.mxu0 0.0
        %1476 = vmatpush1.xpose.msra.mxu0 %v1443
        %1477 = vmatprep.subr.mxu0 0.0
        %1478 = vmatpush1.xpose.msra.mxu0 %v1445
        %1479 = vmatprep.subr.mxu0 0.0
        %1480 = vmatpush1.xpose.msra.mxu0 %v1447
        %1481 = vmatprep.subr.mxu0 0.0
        %1482 = vmatpush1.xpose.msra.mxu0 %v1449
        %1483 = vmatprep.subr.mxu0 0.0
        %1484 = vmatpush1.xpose.msra.mxu0 %v1451
        %1485 = vmatprep.subr.mxu0 0.0
        %1486 = vmatpush1.xpose.msra.mxu0 %v1453
        %1487 = vmatprep.subr.mxu0 0.0
        %1488 = vmatpush1.xpose.msra.mxu0 %v1455
        %1489 = vmatprep.subr.mxu0 0.0
        %1490 = vmatpush1.xpose.msra.mxu0 %v1457
        %1491 = vmatprep.subr.mxu0 0.0
        %1492 = vmatpush1.xpose.msra.mxu0 %v1459
        %1493 = vmatprep.subr.mxu0 0.0
        %1494 = vmatpush1.xpose.msra.mxu0 %v1461
        %1495 = vmatprep.subr.mxu0 0.0
        %1496 = vmatpush1.xpose.msra.mxu0 %v1463
        %1497 = vmatprep.subr.mxu0 0.0
        %1498 = vmatpush1.xpose.msra.mxu0 %v1465
        %1499 = vmatprep.subr.mxu0 0.0
        %1500 = vmatpush1.xpose.msra.mxu0 %v1467
        %1501 = vmatprep.subr.mxu0 0.0
        %1502 = vmatpush1.xpose.msra.mxu0 %v1469
        %1503 = vmatprep.subr.mxu0 0.0
        %1504 = vmatpush1.xpose.msra.mxu0 0.0
        %1505 = vmatprep.subr.mxu0 0.0
        %1506 = vmatpush1.xpose.msra.mxu0 0.0
        %1507 = vmatprep.subr.mxu0 0.0
        %1508 = vmatpush1.xpose.msra.mxu0 0.0
        %1509 = vmatprep.subr.mxu0 0.0
        %1510 = vmatpush1.xpose.msra.mxu0 0.0
        %1511 = vmatprep.subr.mxu0 0.0
        %1512 = vmatpush1.xpose.msra.mxu0 0.0
        %1513 = vmatprep.subr.mxu0 0.0
        %1514 = vmatpush1.xpose.msra.mxu0 0.0
        %1515 = vmatprep.subr.mxu0 0.0
        %1516 = vmatpush1.xpose.msra.mxu0 0.0
        %1517 = vmatprep.subr.mxu0 0.0
        %1518 = vmatpush1.xpose.msra.mxu0 0.0
        %1519 = vmatprep.subr.mxu0 0.0
        %1520 = vmatpush1.xpose.msra.mxu0 0.0
        %1521 = vmatprep.subr.mxu0 0.0
        %1522 = vmatpush1.xpose.msra.mxu0 0.0
        %1523 = vmatprep.subr.mxu0 0.0
        %1524 = vmatpush1.xpose.msra.mxu0 0.0
        %1525 = vmatprep.subr.mxu0 0.0
        %1526 = vmatpush1.xpose.msra.mxu0 0.0
        %1527 = vmatprep.subr.mxu0 0.0
        %1528 = vmatpush1.xpose.msra.mxu0 0.0
        %1529 = vmatprep.subr.mxu0 0.0
        %1530 = vmatpush1.xpose.msra.mxu0 0.0
        %1531 = vmatprep.subr.mxu0 0.0
        %1532 = vmatpush1.xpose.msra.mxu0 0.0
        %1533 = vmatprep.subr.mxu0 0.0
        %1534 = vmatpush1.xpose.msra.mxu0 0.0
        %1535 = vmatprep.mubr.f32.mxu0 0.0
        %1536 = vmatmul.mubr.f32.gmra.mrb[0].mxu0 %v1407
        %v1537 = vpop.f32.mrb[0].mxu0
        %v1538 = vadd.f32 0.0, %v1537
        %v1539 = vpop.f32.mrb[0].mxu0
        %1540 = vmatprep.mubr.f32.mxu0 0.0
        %1541 = vmatmul.mubr.f32.gmra.mrb[0].mxu0 %v1409
        %v1542 = vpop.f32.mrb[0].mxu0
        %v1543 = vadd.f32 0.0, %v1542
        %v1544 = vpop.f32.mrb[0].mxu0
        %1545 = vmatprep.mubr.f32.mxu0 0.0
        %1546 = vmatmul.mubr.f32.gmra.mrb[0].mxu0 %v1411
        %v1547 = vpop.f32.mrb[0].mxu0
        %v1548 = vadd.f32 0.0, %v1547
        %v1549 = vpop.f32.mrb[0].mxu0
        %1550 = vmatprep.mubr.f32.mxu0 0.0
        %1551 = vmatmul.mubr.f32.gmra.mrb[0].mxu0 %v1413
        %v1552 = vpop.f32.mrb[0].mxu0
        %v1553 = vadd.f32 0.0, %v1552
        %v1554 = vpop.f32.mrb[0].mxu0
        %1555 = vmatprep.mubr.f32.mxu0 0.0
        %1556 = vmatmul.mubr.f32.gmra.mrb[0].mxu0 %v1415
        %v1557 = vpop.f32.mrb[0].mxu0
        %v1558 = vadd.f32 0.0, %v1557
        %v1559 = vpop.f32.mrb[0].mxu0
        %1560 = vmatprep.mubr.f32.mxu0 0.0
        %1561 = vmatmul.mubr.f32.gmra.mrb[0].mxu0 %v1417
        %v1562 = vpop.f32.mrb[0].mxu0
        %v1563 = vadd.f32 0.0, %v1562
        %v1564 = vpop.f32.mrb[0].mxu0
        %1565 = vmatprep.mubr.f32.mxu0 0.0
        %1566 = vmatmul.mubr.f32.gmra.mrb[0].mxu0 %v1419
        %v1567 = vpop.f32.mrb[0].mxu0
        %v1568 = vadd.f32 0.0, %v1567
        %v1569 = vpop.f32.mrb[0].mxu0
        %1570 = vmatprep.mubr.f32.mxu0 0.0
        %1571 = vmatmul.mubr.f32.gmra.mrb[0].mxu0 %v1421
        %v1572 = vpop.f32.mrb[0].mxu0
        %v1573 = vadd.f32 0.0, %v1572
        %v1574 = vpop.f32.mrb[0].mxu0
        %1575 = vmatprep.mubr.f32.mxu0 0.0
        %1576 = vmatmul.mubr.f32.gmra.mrb[0].mxu0 %v1423
        %v1577 = vpop.f32.mrb[0].mxu0
        %v1578 = vadd.f32 0.0, %v1577
        %v1579 = vpop.f32.mrb[0].mxu0
        %1580 = vmatprep.mubr.f32.mxu0 0.0
        %1581 = vmatmul.mubr.f32.gmra.mrb[0].mxu0 %v1425
        %v1582 = vpop.f32.mrb[0].mxu0
        %v1583 = vadd.f32 0.0, %v1582
        %v1584 = vpop.f32.mrb[0].mxu0
        %1585 = vmatprep.mubr.f32.mxu0 0.0
        %1586 = vmatmul.mubr.f32.gmra.mrb[0].mxu0 %v1427
        %v1587 = vpop.f32.mrb[0].mxu0
        %v1588 = vadd.f32 0.0, %v1587
        %v1589 = vpop.f32.mrb[0].mxu0
        %1590 = vmatprep.mubr.f32.mxu0 0.0
        %1591 = vmatmul.mubr.f32.gmra.mrb[0].mxu0 %v1429
        %v1592 = vpop.f32.mrb[0].mxu0
        %v1593 = vadd.f32 0.0, %v1592
        %v1594 = vpop.f32.mrb[0].mxu0
        %1595 = vmatprep.mubr.f32.mxu0 0.0
        %1596 = vmatmul.mubr.f32.gmra.mrb[0].mxu0 %v1431
        %v1597 = vpop.f32.mrb[0].mxu0
        %v1598 = vadd.f32 0.0, %v1597
        %v1599 = vpop.f32.mrb[0].mxu0
        %1600 = vmatprep.mubr.f32.mxu0 0.0
        %1601 = vmatmul.mubr.f32.gmra.mrb[0].mxu0 %v1433
        %v1602 = vpop.f32.mrb[0].mxu0
        %v1603 = vadd.f32 0.0, %v1602
        %v1604 = vpop.f32.mrb[0].mxu0
        %1605 = vmatprep.mubr.f32.mxu0 0.0
        %1606 = vmatmul.mubr.f32.gmra.mrb[0].mxu0 %v1435
        %v1607 = vpop.f32.mrb[0].mxu0
        %v1608 = vadd.f32 0.0, %v1607
        %v1609 = vpop.f32.mrb[0].mxu0
        %1610 = vmatprep.mubr.f32.mxu0 0.0
        %1611 = vmatmul.mubr.f32.gmra.mrb[0].mxu0 %v1437
        %v1612 = vpop.f32.mrb[0].mxu0
        %v1613 = vadd.f32 0.0, %v1612
        %v1614 = vpop.f32.mrb[0].mxu0
        %1615 = vdwg.mxu0
        %v1616 = vmul.f32 %v1538, 0.17677669
        %v1617 = vmul.f32 %v1543, 0.17677669
        %v1618 = vmul.f32 %v1548, 0.17677669
        %v1619 = vmul.f32 %v1553, 0.17677669
        %v1620 = vmul.f32 %v1558, 0.17677669
        %v1621 = vmul.f32 %v1563, 0.17677669
        %v1622 = vmul.f32 %v1568, 0.17677669
        %v1623 = vmul.f32 %v1573, 0.17677669
        %v1624 = vmul.f32 %v1578, 0.17677669
        %v1625 = vmul.f32 %v1583, 0.17677669
        %v1626 = vmul.f32 %v1588, 0.17677669
        %v1627 = vmul.f32 %v1593, 0.17677669
        %v1628 = vmul.f32 %v1598, 0.17677669
        %v1629 = vmul.f32 %v1603, 0.17677669
        %v1630 = vmul.f32 %v1608, 0.17677669
        %v1631 = vmul.f32 %v1613, 0.17677669
        %vm1632 = vcmp.gt.f32.partialorder %v417, 0.0
        %vm1633 = vcmp.gt.f32.partialorder %v418, 0.0
        %vm1634 = vcmp.gt.f32.partialorder %v419, 0.0
        %vm1635 = vcmp.gt.f32.partialorder %v420, 0.0
        %vm1636 = vcmp.gt.f32.partialorder %v421, 0.0
        %vm1637 = vcmp.gt.f32.partialorder %v422, 0.0
        %vm1638 = vcmp.gt.f32.partialorder %v423, 0.0
        %vm1639 = vcmp.gt.f32.partialorder %v424, 0.0
        %vm1640 = vcmp.gt.f32.partialorder %v425, 0.0
        %vm1641 = vcmp.gt.f32.partialorder %v426, 0.0
        %vm1642 = vcmp.gt.f32.partialorder %v427, 0.0
        %vm1643 = vcmp.gt.f32.partialorder %v428, 0.0
        %vm1644 = vcmp.gt.f32.partialorder %v429, 0.0
        %vm1645 = vcmp.gt.f32.partialorder %v430, 0.0
        %vm1646 = vcmp.gt.f32.partialorder %v431, 0.0
        %vm1647 = vcmp.gt.f32.partialorder %v432, 0.0
        %v1648 = vsel %vm1632, %v1616, -1e+30
        %v1649 = vsel %vm1633, %v1617, -1e+30
        %v1650 = vsel %vm1634, %v1618, -1e+30
        %v1651 = vsel %vm1635, %v1619, -1e+30
        %v1652 = vsel %vm1636, %v1620, -1e+30
        %v1653 = vsel %vm1637, %v1621, -1e+30
        %v1654 = vsel %vm1638, %v1622, -1e+30
        %v1655 = vsel %vm1639, %v1623, -1e+30
        %v1656 = vsel %vm1640, %v1624, -1e+30
        %v1657 = vsel %vm1641, %v1625, -1e+30
        %v1658 = vsel %vm1642, %v1626, -1e+30
        %v1659 = vsel %vm1643, %v1627, -1e+30
        %v1660 = vsel %vm1644, %v1628, -1e+30
        %v1661 = vsel %vm1645, %v1629, -1e+30
        %v1662 = vsel %vm1646, %v1630, -1e+30
        %v1663 = vsel %vm1647, %v1631, -1e+30
        %1664 = vmax.xlane.f32.xlu0 %v1648
        %v1665 = vpop.xlane.xlu0 %1664
        %1666 = vmax.xlane.f32.xlu0 %v1649
        %v1667 = vpop.xlane.xlu0 %1666
        %1668 = vmax.xlane.f32.xlu0 %v1650
        %v1669 = vpop.xlane.xlu0 %1668
        %1670 = vmax.xlane.f32.xlu0 %v1651
        %v1671 = vpop.xlane.xlu0 %1670
        %1672 = vmax.xlane.f32.xlu0 %v1652
        %v1673 = vpop.xlane.xlu0 %1672
        %1674 = vmax.xlane.f32.xlu0 %v1653
        %v1675 = vpop.xlane.xlu0 %1674
        %1676 = vmax.xlane.f32.xlu0 %v1654
        %v1677 = vpop.xlane.xlu0 %1676
        %1678 = vmax.xlane.f32.xlu0 %v1655
        %v1679 = vpop.xlane.xlu0 %1678
        %1680 = vmax.xlane.f32.xlu0 %v1656
        %v1681 = vpop.xlane.xlu0 %1680
        %1682 = vmax.xlane.f32.xlu0 %v1657
        %v1683 = vpop.xlane.xlu0 %1682
        %1684 = vmax.xlane.f32.xlu0 %v1658
        %v1685 = vpop.xlane.xlu0 %1684
        %1686 = vmax.xlane.f32.xlu0 %v1659
        %v1687 = vpop.xlane.xlu0 %1686
        %1688 = vmax.xlane.f32.xlu0 %v1660
        %v1689 = vpop.xlane.xlu0 %1688
        %1690 = vmax.xlane.f32.xlu0 %v1661
        %v1691 = vpop.xlane.xlu0 %1690
        %1692 = vmax.xlane.f32.xlu0 %v1662
        %v1693 = vpop.xlane.xlu0 %1692
        %1694 = vmax.xlane.f32.xlu0 %v1663
        %v1695 = vpop.xlane.xlu0 %1694
        %v1696 = vsub.f32 %v1648, %v1665
        %v1697 = vsub.f32 %v1649, %v1667
        %v1698 = vsub.f32 %v1650, %v1669
        %v1699 = vsub.f32 %v1651, %v1671
        %v1700 = vsub.f32 %v1652, %v1673
        %v1701 = vsub.f32 %v1653, %v1675
        %v1702 = vsub.f32 %v1654, %v1677
        %v1703 = vsub.f32 %v1655, %v1679
        %v1704 = vsub.f32 %v1656, %v1681
        %v1705 = vsub.f32 %v1657, %v1683
        %v1706 = vsub.f32 %v1658, %v1685
        %v1707 = vsub.f32 %v1659, %v1687
        %v1708 = vsub.f32 %v1660, %v1689
        %v1709 = vsub.f32 %v1661, %v1691
        %v1710 = vsub.f32 %v1662, %v1693
        %v1711 = vsub.f32 %v1663, %v1695
        %v1712 = vmul.f32 %v1696, 1.442695
        %v1713 = vpow.pop %v1712
        %v1714 = vmul.f32 %v1697, 1.442695
        %v1715 = vpow.pop %v1714
        %v1716 = vmul.f32 %v1698, 1.442695
        %v1717 = vpow.pop %v1716
        %v1718 = vmul.f32 %v1699, 1.442695
        %v1719 = vpow.pop %v1718
        %v1720 = vmul.f32 %v1700, 1.442695
        %v1721 = vpow.pop %v1720
        %v1722 = vmul.f32 %v1701, 1.442695
        %v1723 = vpow.pop %v1722
        %v1724 = vmul.f32 %v1702, 1.442695
        %v1725 = vpow.pop %v1724
        %v1726 = vmul.f32 %v1703, 1.442695
        %v1727 = vpow.pop %v1726
        %v1728 = vmul.f32 %v1704, 1.442695
        %v1729 = vpow.pop %v1728
        %v1730 = vmul.f32 %v1705, 1.442695
        %v1731 = vpow.pop %v1730
        %v1732 = vmul.f32 %v1706, 1.442695
        %v1733 = vpow.pop %v1732
        %v1734 = vmul.f32 %v1707, 1.442695
        %v1735 = vpow.pop %v1734
        %v1736 = vmul.f32 %v1708, 1.442695
        %v1737 = vpow.pop %v1736
        %v1738 = vmul.f32 %v1709, 1.442695
        %v1739 = vpow.pop %v1738
        %v1740 = vmul.f32 %v1710, 1.442695
        %v1741 = vpow.pop %v1740
        %v1742 = vmul.f32 %v1711, 1.442695
        %v1743 = vpow.pop %v1742
        %1744 = vadd.xlane.f32.xlu0 %v1713
        %v1745 = vpop.xlane.xlu0 %1744
        %1746 = vadd.xlane.f32.xlu0 %v1715
        %v1747 = vpop.xlane.xlu0 %1746
        %1748 = vadd.xlane.f32.xlu0 %v1717
        %v1749 = vpop.xlane.xlu0 %1748
        %1750 = vadd.xlane.f32.xlu0 %v1719
        %v1751 = vpop.xlane.xlu0 %1750
        %1752 = vadd.xlane.f32.xlu0 %v1721
        %v1753 = vpop.xlane.xlu0 %1752
        %1754 = vadd.xlane.f32.xlu0 %v1723
        %v1755 = vpop.xlane.xlu0 %1754
        %1756 = vadd.xlane.f32.xlu0 %v1725
        %v1757 = vpop.xlane.xlu0 %1756
        %1758 = vadd.xlane.f32.xlu0 %v1727
        %v1759 = vpop.xlane.xlu0 %1758
        %1760 = vadd.xlane.f32.xlu0 %v1729
        %v1761 = vpop.xlane.xlu0 %1760
        %1762 = vadd.xlane.f32.xlu0 %v1731
        %v1763 = vpop.xlane.xlu0 %1762
        %1764 = vadd.xlane.f32.xlu0 %v1733
        %v1765 = vpop.xlane.xlu0 %1764
        %1766 = vadd.xlane.f32.xlu0 %v1735
        %v1767 = vpop.xlane.xlu0 %1766
        %1768 = vadd.xlane.f32.xlu0 %v1737
        %v1769 = vpop.xlane.xlu0 %1768
        %1770 = vadd.xlane.f32.xlu0 %v1739
        %v1771 = vpop.xlane.xlu0 %1770
        %1772 = vadd.xlane.f32.xlu0 %v1741
        %v1773 = vpop.xlane.xlu0 %1772
        %1774 = vadd.xlane.f32.xlu0 %v1743
        %v1775 = vpop.xlane.xlu0 %1774
        %1776 = vrot.lane.b32.xlu0 %v1281, 64
        %v1777 = vpop.permute.xlu0 %1776
        %1778 = vrot.lane.b32.xlu0 %v1286, 64
        %v1779 = vpop.permute.xlu0 %1778
        %1780 = vrot.lane.b32.xlu0 %v1291, 64
        %v1781 = vpop.permute.xlu0 %1780
        %1782 = vrot.lane.b32.xlu0 %v1296, 64
        %v1783 = vpop.permute.xlu0 %1782
        %1784 = vrot.lane.b32.xlu0 %v1301, 64
        %v1785 = vpop.permute.xlu0 %1784
        %1786 = vrot.lane.b32.xlu0 %v1306, 64
        %v1787 = vpop.permute.xlu0 %1786
        %1788 = vrot.lane.b32.xlu0 %v1311, 64
        %v1789 = vpop.permute.xlu0 %1788
        %1790 = vrot.lane.b32.xlu0 %v1316, 64
        %v1791 = vpop.permute.xlu0 %1790
        %1792 = vrot.lane.b32.xlu0 %v1321, 64
        %v1793 = vpop.permute.xlu0 %1792
        %1794 = vrot.lane.b32.xlu0 %v1326, 64
        %v1795 = vpop.permute.xlu0 %1794
        %1796 = vrot.lane.b32.xlu0 %v1331, 64
        %v1797 = vpop.permute.xlu0 %1796
        %1798 = vrot.lane.b32.xlu0 %v1336, 64
        %v1799 = vpop.permute.xlu0 %1798
        %1800 = vrot.lane.b32.xlu0 %v1341, 64
        %v1801 = vpop.permute.xlu0 %1800
        %1802 = vrot.lane.b32.xlu0 %v1346, 64
        %v1803 = vpop.permute.xlu0 %1802
        %1804 = vrot.lane.b32.xlu0 %v1351, 64
        %v1805 = vpop.permute.xlu0 %1804
        %1806 = vrot.lane.b32.xlu0 %v1356, 64
        %v1807 = vpop.permute.xlu0 %1806
        %1824 = vmatprep.subr.mxu0 0.0
        %1825 = vmatpush1.msra.mxu0 %v1777
        %1826 = vmatprep.subr.mxu0 0.0
        %1827 = vmatpush1.msra.mxu0 %v1779
        %1828 = vmatprep.subr.mxu0 0.0
        %1829 = vmatpush1.msra.mxu0 %v1781
        %1830 = vmatprep.subr.mxu0 0.0
        %1831 = vmatpush1.msra.mxu0 %v1783
        %1832 = vmatprep.subr.mxu0 0.0
        %1833 = vmatpush1.msra.mxu0 %v1785
        %1834 = vmatprep.subr.mxu0 0.0
        %1835 = vmatpush1.msra.mxu0 %v1787
        %1836 = vmatprep.subr.mxu0 0.0
        %1837 = vmatpush1.msra.mxu0 %v1789
        %1838 = vmatprep.subr.mxu0 0.0
        %1839 = vmatpush1.msra.mxu0 %v1791
        %1840 = vmatprep.subr.mxu0 0.0
        %1841 = vmatpush1.msra.mxu0 %v1793
        %1842 = vmatprep.subr.mxu0 0.0
        %1843 = vmatpush1.msra.mxu0 %v1795
        %1844 = vmatprep.subr.mxu0 0.0
        %1845 = vmatpush1.msra.mxu0 %v1797
        %1846 = vmatprep.subr.mxu0 0.0
        %1847 = vmatpush1.msra.mxu0 %v1799
        %1848 = vmatprep.subr.mxu0 0.0
        %1849 = vmatpush1.msra.mxu0 %v1801
        %1850 = vmatprep.subr.mxu0 0.0
        %1851 = vmatpush1.msra.mxu0 %v1803
        %1852 = vmatprep.subr.mxu0 0.0
        %1853 = vmatpush1.msra.mxu0 %v1805
        %1854 = vmatprep.subr.mxu0 0.0
        %1855 = vmatpush1.msra.mxu0 %v1807
        %1856 = vmatprep.subr.mxu0 0.0
        %1857 = vmatpush1.msra.mxu0 0.0
        %1858 = vmatprep.subr.mxu0 0.0
        %1859 = vmatpush1.msra.mxu0 0.0
        %1860 = vmatprep.subr.mxu0 0.0
        %1861 = vmatpush1.msra.mxu0 0.0
        %1862 = vmatprep.subr.mxu0 0.0
        %1863 = vmatpush1.msra.mxu0 0.0
        %1864 = vmatprep.subr.mxu0 0.0
        %1865 = vmatpush1.msra.mxu0 0.0
        %1866 = vmatprep.subr.mxu0 0.0
        %1867 = vmatpush1.msra.mxu0 0.0
        %1868 = vmatprep.subr.mxu0 0.0
        %1869 = vmatpush1.msra.mxu0 0.0
        %1870 = vmatprep.subr.mxu0 0.0
        %1871 = vmatpush1.msra.mxu0 0.0
        %1872 = vmatprep.subr.mxu0 0.0
        %1873 = vmatpush1.msra.mxu0 0.0
        %1874 = vmatprep.subr.mxu0 0.0
        %1875 = vmatpush1.msra.mxu0 0.0
        %1876 = vmatprep.subr.mxu0 0.0
        %1877 = vmatpush1.msra.mxu0 0.0
        %1878 = vmatprep.subr.mxu0 0.0
        %1879 = vmatpush1.msra.mxu0 0.0
        %1880 = vmatprep.subr.mxu0 0.0
        %1881 = vmatpush1.msra.mxu0 0.0
        %1882 = vmatprep.subr.mxu0 0.0
        %1883 = vmatpush1.msra.mxu0 0.0
        %1884 = vmatprep.subr.mxu0 0.0
        %1885 = vmatpush1.msra.mxu0 0.0
        %1886 = vmatprep.subr.mxu0 0.0
        %1887 = vmatpush1.msra.mxu0 0.0
        %1888 = vmatprep.mubr.f32.mxu0 0.0
        %1889 = vmatmul.mubr.f32.gmra.mrb[0].mxu0 %v1713
        %v1890 = vpop.f32.mrb[0].mxu0
        %v1891 = vadd.f32 0.0, %v1890
        %v1892 = vpop.f32.mrb[0].mxu0
        %1893 = vmatprep.mubr.f32.mxu0 0.0
        %1894 = vmatmul.mubr.f32.gmra.mrb[0].mxu0 %v1715
        %v1895 = vpop.f32.mrb[0].mxu0
        %v1896 = vadd.f32 0.0, %v1895
        %v1897 = vpop.f32.mrb[0].mxu0
        %1898 = vmatprep.mubr.f32.mxu0 0.0
        %1899 = vmatmul.mubr.f32.gmra.mrb[0].mxu0 %v1717
        %v1900 = vpop.f32.mrb[0].mxu0
        %v1901 = vadd.f32 0.0, %v1900
        %v1902 = vpop.f32.mrb[0].mxu0
        %1903 = vmatprep.mubr.f32.mxu0 0.0
        %1904 = vmatmul.mubr.f32.gmra.mrb[0].mxu0 %v1719
        %v1905 = vpop.f32.mrb[0].mxu0
        %v1906 = vadd.f32 0.0, %v1905
        %v1907 = vpop.f32.mrb[0].mxu0
        %1908 = vmatprep.mubr.f32.mxu0 0.0
        %1909 = vmatmul.mubr.f32.gmra.mrb[0].mxu0 %v1721
        %v1910 = vpop.f32.mrb[0].mxu0
        %v1911 = vadd.f32 0.0, %v1910
        %v1912 = vpop.f32.mrb[0].mxu0
        %1913 = vmatprep.mubr.f32.mxu0 0.0
        %1914 = vmatmul.mubr.f32.gmra.mrb[0].mxu0 %v1723
        %v1915 = vpop.f32.mrb[0].mxu0
        %v1916 = vadd.f32 0.0, %v1915
        %v1917 = vpop.f32.mrb[0].mxu0
        %1918 = vmatprep.mubr.f32.mxu0 0.0
        %1919 = vmatmul.mubr.f32.gmra.mrb[0].mxu0 %v1725
        %v1920 = vpop.f32.mrb[0].mxu0
        %v1921 = vadd.f32 0.0, %v1920
        %v1922 = vpop.f32.mrb[0].mxu0
        %1923 = vmatprep.mubr.f32.mxu0 0.0
        %1924 = vmatmul.mubr.f32.gmra.mrb[0].mxu0 %v1727
        %v1925 = vpop.f32.mrb[0].mxu0
        %v1926 = vadd.f32 0.0, %v1925
        %v1927 = vpop.f32.mrb[0].mxu0
        %1928 = vmatprep.mubr.f32.mxu0 0.0
        %1929 = vmatmul.mubr.f32.gmra.mrb[0].mxu0 %v1729
        %v1930 = vpop.f32.mrb[0].mxu0
        %v1931 = vadd.f32 0.0, %v1930
        %v1932 = vpop.f32.mrb[0].mxu0
        %1933 = vmatprep.mubr.f32.mxu0 0.0
        %1934 = vmatmul.mubr.f32.gmra.mrb[0].mxu0 %v1731
        %v1935 = vpop.f32.mrb[0].mxu0
        %v1936 = vadd.f32 0.0, %v1935
        %v1937 = vpop.f32.mrb[0].mxu0
        %1938 = vmatprep.mubr.f32.mxu0 0.0
        %1939 = vmatmul.mubr.f32.gmra.mrb[0].mxu0 %v1733
        %v1940 = vpop.f32.mrb[0].mxu0
        %v1941 = vadd.f32 0.0, %v1940
        %v1942 = vpop.f32.mrb[0].mxu0
        %1943 = vmatprep.mubr.f32.mxu0 0.0
        %1944 = vmatmul.mubr.f32.gmra.mrb[0].mxu0 %v1735
        %v1945 = vpop.f32.mrb[0].mxu0
        %v1946 = vadd.f32 0.0, %v1945
        %v1947 = vpop.f32.mrb[0].mxu0
        %1948 = vmatprep.mubr.f32.mxu0 0.0
        %1949 = vmatmul.mubr.f32.gmra.mrb[0].mxu0 %v1737
        %v1950 = vpop.f32.mrb[0].mxu0
        %v1951 = vadd.f32 0.0, %v1950
        %v1952 = vpop.f32.mrb[0].mxu0
        %1953 = vmatprep.mubr.f32.mxu0 0.0
        %1954 = vmatmul.mubr.f32.gmra.mrb[0].mxu0 %v1739
        %v1955 = vpop.f32.mrb[0].mxu0
        %v1956 = vadd.f32 0.0, %v1955
        %v1957 = vpop.f32.mrb[0].mxu0
        %1958 = vmatprep.mubr.f32.mxu0 0.0
        %1959 = vmatmul.mubr.f32.gmra.mrb[0].mxu0 %v1741
        %v1960 = vpop.f32.mrb[0].mxu0
        %v1961 = vadd.f32 0.0, %v1960
        %v1962 = vpop.f32.mrb[0].mxu0
        %1963 = vmatprep.mubr.f32.mxu0 0.0
        %1964 = vmatmul.mubr.f32.gmra.mrb[0].mxu0 %v1743
        %v1965 = vpop.f32.mrb[0].mxu0
        %v1966 = vadd.f32 0.0, %v1965
        %v1967 = vpop.f32.mrb[0].mxu0
        %1968 = vdwg.mxu0
        %v1969 = vrcp.pop %v1745
        %v1970 = vmul.f32 %v1891, %v1969
        %v1971 = vrcp.pop %v1747
        %v1972 = vmul.f32 %v1896, %v1971
        %v1973 = vrcp.pop %v1749
        %v1974 = vmul.f32 %v1901, %v1973
        %v1975 = vrcp.pop %v1751
        %v1976 = vmul.f32 %v1906, %v1975
        %v1977 = vrcp.pop %v1753
        %v1978 = vmul.f32 %v1911, %v1977
        %v1979 = vrcp.pop %v1755
        %v1980 = vmul.f32 %v1916, %v1979
        %v1981 = vrcp.pop %v1757
        %v1982 = vmul.f32 %v1921, %v1981
        %v1983 = vrcp.pop %v1759
        %v1984 = vmul.f32 %v1926, %v1983
        %v1985 = vrcp.pop %v1761
        %v1986 = vmul.f32 %v1931, %v1985
        %v1987 = vrcp.pop %v1763
        %v1988 = vmul.f32 %v1936, %v1987
        %v1989 = vrcp.pop %v1765
        %v1990 = vmul.f32 %v1941, %v1989
        %v1991 = vrcp.pop %v1767
        %v1992 = vmul.f32 %v1946, %v1991
        %v1993 = vrcp.pop %v1769
        %v1994 = vmul.f32 %v1951, %v1993
        %v1995 = vrcp.pop %v1771
        %v1996 = vmul.f32 %v1956, %v1995
        %v1997 = vrcp.pop %v1773
        %v1998 = vmul.f32 %v1961, %v1997
        %v1999 = vrcp.pop %v1775
        %v2000 = vmul.f32 %v1966, %v1999
        %2001 = vrot.lane.b32.xlu0 %v1281, 32
        %v2002 = vpop.permute.xlu0 %2001
        %2003 = vrot.lane.b32.xlu0 %v1286, 32
        %v2004 = vpop.permute.xlu0 %2003
        %2005 = vrot.lane.b32.xlu0 %v1291, 32
        %v2006 = vpop.permute.xlu0 %2005
        %2007 = vrot.lane.b32.xlu0 %v1296, 32
        %v2008 = vpop.permute.xlu0 %2007
        %2009 = vrot.lane.b32.xlu0 %v1301, 32
        %v2010 = vpop.permute.xlu0 %2009
        %2011 = vrot.lane.b32.xlu0 %v1306, 32
        %v2012 = vpop.permute.xlu0 %2011
        %2013 = vrot.lane.b32.xlu0 %v1311, 32
        %v2014 = vpop.permute.xlu0 %2013
        %2015 = vrot.lane.b32.xlu0 %v1316, 32
        %v2016 = vpop.permute.xlu0 %2015
        %2017 = vrot.lane.b32.xlu0 %v1321, 32
        %v2018 = vpop.permute.xlu0 %2017
        %2019 = vrot.lane.b32.xlu0 %v1326, 32
        %v2020 = vpop.permute.xlu0 %2019
        %2021 = vrot.lane.b32.xlu0 %v1331, 32
        %v2022 = vpop.permute.xlu0 %2021
        %2023 = vrot.lane.b32.xlu0 %v1336, 32
        %v2024 = vpop.permute.xlu0 %2023
        %2025 = vrot.lane.b32.xlu0 %v1341, 32
        %v2026 = vpop.permute.xlu0 %2025
        %2027 = vrot.lane.b32.xlu0 %v1346, 32
        %v2028 = vpop.permute.xlu0 %2027
        %2029 = vrot.lane.b32.xlu0 %v1351, 32
        %v2030 = vpop.permute.xlu0 %2029
        %2031 = vrot.lane.b32.xlu0 %v1356, 32
        %v2032 = vpop.permute.xlu0 %2031
        %v2049 = vadd.f32 %v1970, %v2002
        %v2050 = vadd.f32 %v1972, %v2004
        %v2051 = vadd.f32 %v1974, %v2006
        %v2052 = vadd.f32 %v1976, %v2008
        %v2053 = vadd.f32 %v1978, %v2010
        %v2054 = vadd.f32 %v1980, %v2012
        %v2055 = vadd.f32 %v1982, %v2014
        %v2056 = vadd.f32 %v1984, %v2016
        %v2057 = vadd.f32 %v1986, %v2018
        %v2058 = vadd.f32 %v1988, %v2020
        %v2059 = vadd.f32 %v1990, %v2022
        %v2060 = vadd.f32 %v1992, %v2024
        %v2061 = vadd.f32 %v1994, %v2026
        %v2062 = vadd.f32 %v1996, %v2028
        %v2063 = vadd.f32 %v1998, %v2030
        %v2064 = vadd.f32 %v2000, %v2032
        %v2065 = vld [vmem:[%s9] sm:$0xff]
        %v2066 = vld [vmem:[%s9 + $0x8] sm:$0xff]
        %v2067 = vld [vmem:[%s9 + $0x10] sm:$0xff]
        %v2068 = vld [vmem:[%s9 + $0x18] sm:$0xff]
        %v2069 = vld [vmem:[%s10] sm:$0x1]
        %v2071 = vlaneseq
        %v2072 = vshrl.u32 %v2071, 7
        %v2073 = vsub.s32 0, %v2072
        %v2074 = vrot.slane %v2069, %v2073
        %v2077 = vsel %vm1165, %v2049, 0
        %v2080 = vsel %vm1165, %v2050, 0
        %v2083 = vsel %vm1165, %v2051, 0
        %v2086 = vsel %vm1165, %v2052, 0
        %v2089 = vsel %vm1165, %v2053, 0
        %v2092 = vsel %vm1165, %v2054, 0
        %v2095 = vsel %vm1165, %v2055, 0
        %v2098 = vsel %vm1165, %v2056, 0
        %v2101 = vsel %vm1165, %v2057, 0
        %v2104 = vsel %vm1165, %v2058, 0
        %v2107 = vsel %vm1165, %v2059, 0
        %v2110 = vsel %vm1165, %v2060, 0
        %v2113 = vsel %vm1165, %v2061, 0
        %v2116 = vsel %vm1165, %v2062, 0
        %v2119 = vsel %vm1165, %v2063, 0
        %v2122 = vsel %vm1165, %v2064, 0
        %2124 = vmatprep.subr.mxu0 0.0
        %2125 = vmatpush1.msra.mxu0 %v2065
        %2126 = vmatprep.subr.mxu0 0.0
        %2127 = vmatpush1.msra.mxu0 %v2066
        %2128 = vmatprep.subr.mxu0 0.0
        %2129 = vmatpush1.msra.mxu0 %v2067
        %2130 = vmatprep.subr.mxu0 0.0
        %2131 = vmatpush1.msra.mxu0 %v2068
        %2132 = vmatprep.subr.mxu0 0.0
        %2133 = vmatpush1.msra.mxu0 0.0
        %2134 = vmatprep.subr.mxu0 0.0
        %2135 = vmatpush1.msra.mxu0 0.0
        %2136 = vmatprep.subr.mxu0 0.0
        %2137 = vmatpush1.msra.mxu0 0.0
        %2138 = vmatprep.subr.mxu0 0.0
        %2139 = vmatpush1.msra.mxu0 0.0
        %2140 = vmatprep.subr.mxu0 0.0
        %2141 = vmatpush1.msra.mxu0 0.0
        %2142 = vmatprep.subr.mxu0 0.0
        %2143 = vmatpush1.msra.mxu0 0.0
        %2144 = vmatprep.subr.mxu0 0.0
        %2145 = vmatpush1.msra.mxu0 0.0
        %2146 = vmatprep.subr.mxu0 0.0
        %2147 = vmatpush1.msra.mxu0 0.0
        %2148 = vmatprep.subr.mxu0 0.0
        %2149 = vmatpush1.msra.mxu0 0.0
        %2150 = vmatprep.subr.mxu0 0.0
        %2151 = vmatpush1.msra.mxu0 0.0
        %2152 = vmatprep.subr.mxu0 0.0
        %2153 = vmatpush1.msra.mxu0 0.0
        %2154 = vmatprep.subr.mxu0 0.0
        %2155 = vmatpush1.msra.mxu0 0.0
        %2156 = vmatprep.subr.mxu0 0.0
        %2157 = vmatpush1.msra.mxu0 0.0
        %2158 = vmatprep.subr.mxu0 0.0
        %2159 = vmatpush1.msra.mxu0 0.0
        %2160 = vmatprep.subr.mxu0 0.0
        %2161 = vmatpush1.msra.mxu0 0.0
        %2162 = vmatprep.subr.mxu0 0.0
        %2163 = vmatpush1.msra.mxu0 0.0
        %2164 = vmatprep.subr.mxu0 0.0
        %2165 = vmatpush1.msra.mxu0 0.0
        %2166 = vmatprep.subr.mxu0 0.0
        %2167 = vmatpush1.msra.mxu0 0.0
        %2168 = vmatprep.subr.mxu0 0.0
        %2169 = vmatpush1.msra.mxu0 0.0
        %2170 = vmatprep.subr.mxu0 0.0
        %2171 = vmatpush1.msra.mxu0 0.0
        %2172 = vmatprep.subr.mxu0 0.0
        %2173 = vmatpush1.msra.mxu0 0.0
        %2174 = vmatprep.subr.mxu0 0.0
        %2175 = vmatpush1.msra.mxu0 0.0
        %2176 = vmatprep.subr.mxu0 0.0
        %2177 = vmatpush1.msra.mxu0 0.0
        %2178 = vmatprep.subr.mxu0 0.0
        %2179 = vmatpush1.msra.mxu0 0.0
        %2180 = vmatprep.subr.mxu0 0.0
        %2181 = vmatpush1.msra.mxu0 0.0
        %2182 = vmatprep.subr.mxu0 0.0
        %2183 = vmatpush1.msra.mxu0 0.0
        %2184 = vmatprep.subr.mxu0 0.0
        %2185 = vmatpush1.msra.mxu0 0.0
        %2186 = vmatprep.subr.mxu0 0.0
        %2187 = vmatpush1.msra.mxu0 0.0
        %2188 = vmatprep.mubr.f32.mxu0 0.0
        %2189 = vmatmul.mubr.f32.gmra.mrb[0].mxu0 %v2077
        %v2190 = vpop.f32.mrb[0].mxu0
        %v2191 = vadd.f32 %v2074, %v2190
        %v2192 = vpop.f32.mrb[0].mxu0
        %2193 = vmatprep.mubr.f32.mxu0 0.0
        %2194 = vmatmul.mubr.f32.gmra.mrb[0].mxu0 %v2080
        %v2195 = vpop.f32.mrb[0].mxu0
        %v2196 = vadd.f32 %v2074, %v2195
        %v2197 = vpop.f32.mrb[0].mxu0
        %2198 = vmatprep.mubr.f32.mxu0 0.0
        %2199 = vmatmul.mubr.f32.gmra.mrb[0].mxu0 %v2083
        %v2200 = vpop.f32.mrb[0].mxu0
        %v2201 = vadd.f32 %v2074, %v2200
        %v2202 = vpop.f32.mrb[0].mxu0
        %2203 = vmatprep.mubr.f32.mxu0 0.0
        %2204 = vmatmul.mubr.f32.gmra.mrb[0].mxu0 %v2086
        %v2205 = vpop.f32.mrb[0].mxu0
        %v2206 = vadd.f32 %v2074, %v2205
        %v2207 = vpop.f32.mrb[0].mxu0
        %2208 = vmatprep.mubr.f32.mxu0 0.0
        %2209 = vmatmul.mubr.f32.gmra.mrb[0].mxu0 %v2089
        %v2210 = vpop.f32.mrb[0].mxu0
        %v2211 = vadd.f32 %v2074, %v2210
        %v2212 = vpop.f32.mrb[0].mxu0
        %2213 = vmatprep.mubr.f32.mxu0 0.0
        %2214 = vmatmul.mubr.f32.gmra.mrb[0].mxu0 %v2092
        %v2215 = vpop.f32.mrb[0].mxu0
        %v2216 = vadd.f32 %v2074, %v2215
        %v2217 = vpop.f32.mrb[0].mxu0
        %2218 = vmatprep.mubr.f32.mxu0 0.0
        %2219 = vmatmul.mubr.f32.gmra.mrb[0].mxu0 %v2095
        %v2220 = vpop.f32.mrb[0].mxu0
        %v2221 = vadd.f32 %v2074, %v2220
        %v2222 = vpop.f32.mrb[0].mxu0
        %2223 = vmatprep.mubr.f32.mxu0 0.0
        %2224 = vmatmul.mubr.f32.gmra.mrb[0].mxu0 %v2098
        %v2225 = vpop.f32.mrb[0].mxu0
        %v2226 = vadd.f32 %v2074, %v2225
        %v2227 = vpop.f32.mrb[0].mxu0
        %2228 = vmatprep.mubr.f32.mxu0 0.0
        %2229 = vmatmul.mubr.f32.gmra.mrb[0].mxu0 %v2101
        %v2230 = vpop.f32.mrb[0].mxu0
        %v2231 = vadd.f32 %v2074, %v2230
        %v2232 = vpop.f32.mrb[0].mxu0
        %2233 = vmatprep.mubr.f32.mxu0 0.0
        %2234 = vmatmul.mubr.f32.gmra.mrb[0].mxu0 %v2104
        %v2235 = vpop.f32.mrb[0].mxu0
        %v2236 = vadd.f32 %v2074, %v2235
        %v2237 = vpop.f32.mrb[0].mxu0
        %2238 = vmatprep.mubr.f32.mxu0 0.0
        %2239 = vmatmul.mubr.f32.gmra.mrb[0].mxu0 %v2107
        %v2240 = vpop.f32.mrb[0].mxu0
        %v2241 = vadd.f32 %v2074, %v2240
        %v2242 = vpop.f32.mrb[0].mxu0
        %2243 = vmatprep.mubr.f32.mxu0 0.0
        %2244 = vmatmul.mubr.f32.gmra.mrb[0].mxu0 %v2110
        %v2245 = vpop.f32.mrb[0].mxu0
        %v2246 = vadd.f32 %v2074, %v2245
        %v2247 = vpop.f32.mrb[0].mxu0
        %2248 = vmatprep.mubr.f32.mxu0 0.0
        %2249 = vmatmul.mubr.f32.gmra.mrb[0].mxu0 %v2113
        %v2250 = vpop.f32.mrb[0].mxu0
        %v2251 = vadd.f32 %v2074, %v2250
        %v2252 = vpop.f32.mrb[0].mxu0
        %2253 = vmatprep.mubr.f32.mxu0 0.0
        %2254 = vmatmul.mubr.f32.gmra.mrb[0].mxu0 %v2116
        %v2255 = vpop.f32.mrb[0].mxu0
        %v2256 = vadd.f32 %v2074, %v2255
        %v2257 = vpop.f32.mrb[0].mxu0
        %2258 = vmatprep.mubr.f32.mxu0 0.0
        %2259 = vmatmul.mubr.f32.gmra.mrb[0].mxu0 %v2119
        %v2260 = vpop.f32.mrb[0].mxu0
        %v2261 = vadd.f32 %v2074, %v2260
        %v2262 = vpop.f32.mrb[0].mxu0
        %2263 = vmatprep.mubr.f32.mxu0 0.0
        %2264 = vmatmul.mubr.f32.gmra.mrb[0].mxu0 %v2122
        %v2265 = vpop.f32.mrb[0].mxu0
        %v2266 = vadd.f32 %v2074, %v2265
        %v2267 = vpop.f32.mrb[0].mxu0
        %2268 = vdwg.mxu0
        %2269 = vst [vmem:[%s379] sm:$0xff] %v2191
        %2270 = vst [vmem:[%s379 + $0x8] sm:$0xff] %v2196
        %2271 = vst [vmem:[%s379 + $0x10] sm:$0xff] %v2201
        %2272 = vst [vmem:[%s379 + $0x18] sm:$0xff] %v2206
        %2273 = vst [vmem:[%s379 + $0x20] sm:$0xff] %v2211
        %2274 = vst [vmem:[%s379 + $0x28] sm:$0xff] %v2216
        %2275 = vst [vmem:[%s379 + $0x30] sm:$0xff] %v2221
        %2276 = vst [vmem:[%s379 + $0x38] sm:$0xff] %v2226
        %2277 = vst [vmem:[%s379 + $0x40] sm:$0xff] %v2231
        %2278 = vst [vmem:[%s379 + $0x48] sm:$0xff] %v2236
        %2279 = vst [vmem:[%s379 + $0x50] sm:$0xff] %v2241
        %2280 = vst [vmem:[%s379 + $0x58] sm:$0xff] %v2246
        %2281 = vst [vmem:[%s379 + $0x60] sm:$0xff] %v2251
        %2282 = vst [vmem:[%s379 + $0x68] sm:$0xff] %v2256
        %2283 = vst [vmem:[%s379 + $0x70] sm:$0xff] %v2261
        %2284 = vst [vmem:[%s379 + $0x78] sm:$0xff] %v2266
        %s2285 = sand.u32 %s269, 1
        %s2286 = scalar_lea.sflag [#allocation3], %s2285
        %s2287 = sand.u32 %s269, 1
        %s2288 = smul.addr %s2287, 128
        %s2289 = scalar_lea.vmem [#allocation2], %s2288
        // Predicated region
        $region65: #{stgcn_forward.1} parent=63 // pred_check
          %p2290 = pneg %p279
        $region66: #{stgcn_forward.1} parent=63 // pred_check_branch
          %2292 = sbr.rel (%p2290) target = $region68
        $region67: #{stgcn_forward.1} parent=63 // pred_region
          %s2294 = ssub.s32 2048, 2048
          %2295 = vsyncadd %s2286, %s2294
          %s2296 = smul.addr %s25, 16
          %s2297 = smul.addr %s2296, 128
          %s2298 = scalar_lea.hbm %s11, %s2297
          %s2299 = sshll.u32 %s2289, 4
          %s2300 = int_to_ptr.vmem [resolvable:$true] %s2299
          %2305 = dma.vmem_to_hbm [thread:$0]  %s2300, 2048, %s2298, %s2286, 128, 128, 8
        $region68: #{stgcn_forward.1} parent=63 // pred_fallthru
          _
      $region64: #{stgcn_forward.1} parent=5 // pred_fallthru
        _
      %p2306 = scmp.le.s32.totalorder 2, %s20
      // Predicated region
      $region69: #{stgcn_forward.1} parent=5 // pred_check
        %p2307 = pneg %p2306
      $region70: #{stgcn_forward.1} parent=5 // pred_check_branch
        %2309 = sbr.rel (%p2307) target = $region72
      $region71: #{stgcn_forward.1} parent=5 // pred_region
        %s2310 = ssub.s32 %s20, 2
        // Predicated region
        $region73: #{stgcn_forward.1} parent=71 // pred_check
          %p2311 = pneg %p285
        $region74: #{stgcn_forward.1} parent=71 // pred_check_branch
          %2313 = sbr.rel (%p2311) target = $region76
        $region75: #{stgcn_forward.1} parent=71 // pred_region
          %s2314 = sand.u32 %s270, 1
          %s2315 = scalar_lea.sflag [#allocation3], %s2314
          %s2316 = sand.u32 %s270, 1
          %s2317 = smul.addr %s2316, 128
          %s2318 = scalar_lea.vmem [#allocation2], %s2317
          %2319 = dma.done %s2315, 2048
        $region76: #{stgcn_forward.1} parent=71 // pred_fallthru
          _
      $region72: #{stgcn_forward.1} parent=5 // pred_fallthru
        _
    $region6: #{stgcn_forward.1} parent=1 // loop_footer
      %s24 = sadd.s32 1, %s20
    $region7: #{stgcn_forward.1} parent=1 // loop_footer_branch
      %19 = sbr.rel target = $region3
    $region8: #{stgcn_forward.1} parent=1 // loop_exit
      _
    %2320 = vsyncpa [#allocation3], 1
    %s2321 = scalar_lea.sflag [#allocation3], 1
    %2322 = vsyncpa %s2321, 1

</llo_original>
